<compile_context>
chip_gen: v5e
topology: v5e:2x2
jax: 0.10.0
libtpu: 0.0.40
codegen_flags: <defaults>
</compile_context>

<pallas_src>
import math
import functools

import numpy as np
import jax
import jax.numpy as jnp
from jax.experimental import pallas as pl
from jax.experimental.pallas import tpu as pltpu


# --------------------------------- kernel ------------------------------------

def self_attention_kernel(x_ref, wqkv_ref, bqkv_ref, wo_ref, bo_ref, o_ref,
                          *, heads, head_dim, hd_pad):
    Bt, S, D = x_ref.shape
    hd = heads * head_dim
    N = Bt * S

    # Whole (Bt, S, D) tile as one (N, D) slab (leading-dim merge, lane dim untouched).
    x = x_ref[...].reshape(N, D)

    # Fused, pre-scaled, tile-padded Q/K/V projection: one MXU push.
    qkv = jnp.dot(x, wqkv_ref[...], preferred_element_type=jnp.float32) + bqkv_ref[...]
    # Lane-tile-aligned slices: each packed segment starts at a multiple of 128 lanes.
    q = qkv[:, 0 * hd_pad: 0 * hd_pad + hd]          # 1/sqrt(Dh) folded into weights
    k = qkv[:, 1 * hd_pad: 1 * hd_pad + hd]
    v = qkv[:, 2 * hd_pad: 2 * hd_pad + hd]

    # Head split without jnp.transpose: lane-layout-aware einshape (XLU slot).
    #   (N, H*Dh) -> (N, H, Dh) -> (H, N, Dh) -> (H*Bt, S, Dh)   [group g = h*Bt + b]
    def split_heads(t):
        t = pltpu.einshape('nhd->hnd', t.reshape(N, heads, head_dim))
        return t.reshape(heads * Bt, S, head_dim)

    qh, kh, vh = split_heads(q), split_heads(k), split_heads(v)

    # Batched attention over (head, batch) groups; softmax statistics stay in f32.
    scores = jnp.einsum('gqd,gkd->gqk', qh, kh,
                        preferred_element_type=jnp.float32)          # (H*Bt, S, S)
    scores = scores - jnp.max(scores, axis=-1, keepdims=True)
    p = jnp.exp(scores)
    p = p * pl.reciprocal(jnp.sum(p, axis=-1, keepdims=True), approx=True)  # EUP

    ctx = jnp.einsum('gqk,gkd->gqd', p, vh,
                     preferred_element_type=jnp.float32)             # (H*Bt, S, Dh)

    # Head re-pack: (H*Bt, S, Dh) -> (H, N, Dh) -> (N, H, Dh) -> (N, H*Dh).
    attn = pltpu.einshape('hnd->nhd', ctx.reshape(heads, N, head_dim)).reshape(N, hd)

    # Output projection.
    out = jnp.dot(attn, wo_ref[...], preferred_element_type=jnp.float32) + bo_ref[...]
    o_ref[...] = out.reshape(Bt, S, D).astype(o_ref.dtype)


# --------------------------- host-side weight packing -------------------------

def pack_qkv(wq, bq, wk, bk, wv, bv, *, head_dim):
    """One-time host-side packing.

    Folds 1/sqrt(head_dim) into the q weights/bias and zero-pads each of the
    q/k/v segments to a full 128-lane tile so the in-kernel slices are
    tile-aligned (no cross-lane shuffles)."""
    inv_scale = 1.0 / math.sqrt(head_dim)
    hd = wq.shape[1]
    hd_pad = ((hd + 127) // 128) * 128

    def pad(a):
        return jnp.pad(a, ((0, 0), (0, hd_pad - a.shape[1])))

    wqkv = jnp.concatenate([pad(wq * inv_scale), pad(wk), pad(wv)], axis=1)
    bqkv = jnp.concatenate([pad(bq * inv_scale), pad(bk), pad(bv)], axis=1)
    return wqkv, bqkv, hd_pad


# ------------------------------ host-side wrapper -----------------------------

def self_attention(x, wqkv, bqkv, wo, bo, *, heads, head_dim, hd_pad,
                   batch_block=None):
    """batch_block=None (default) -> one grid step over the whole batch
    (best on single-TC v5e/v6e).  On dual-TC v7x pass batch_block=B//2 (or 1)
    so the "parallel" batch axis shards across TensorCores."""
    B, S, D = x.shape
    if batch_block is None:
        batch_block = B
    assert B % batch_block == 0
    nb = B // batch_block

    hd = heads * head_dim
    n_tok = B * S
    flops = (2 * n_tok * D * 3 * hd                     # QKV projection
             + 2 * B * heads * S * S * head_dim         # scores
             + 2 * B * heads * S * S * head_dim         # context
             + 2 * n_tok * hd * D)                      # output projection
    bytes_accessed = 4 * (x.size + wqkv.size + bqkv.size + wo.size + bo.size
                          + n_tok * D)
    cost = pl.CostEstimate(flops=flops,
                           transcendentals=B * heads * S * S,
                           bytes_accessed=bytes_accessed)

    kernel = functools.partial(self_attention_kernel, heads=heads,
                               head_dim=head_dim, hd_pad=hd_pad)
    return pl.pallas_call(
        kernel,
        out_shape=jax.ShapeDtypeStruct((B, S, D), x.dtype),
        grid=(nb,),
        in_specs=[
            pl.BlockSpec((batch_block, S, D), lambda b: (b, 0, 0)),
            pl.BlockSpec(wqkv.shape, lambda b: (0, 0)),
            pl.BlockSpec(bqkv.shape, lambda b: (0, 0)),
            pl.BlockSpec(wo.shape, lambda b: (0, 0)),
            pl.BlockSpec(bo.shape, lambda b: (0, 0)),
        ],
        out_specs=pl.BlockSpec((batch_block, S, D), lambda b: (b, 0, 0)),
        compiler_params=pltpu.CompilerParams(dimension_semantics=("parallel",)),
        cost_estimate=cost,
    )(x, wqkv, bqkv, wo, bo)


# ------------------------- pure-JAX reference (parity) ------------------------

def self_attention_ref(x, wq, bq, wk, bk, wv, bv, wo, bo, *, heads, head_dim):
    """Mirrors the PyTorch SelfAttention.forward (LinearGeneral == flat matmul)."""
    B, S, D = x.shape
    q = (x @ wq + bq).reshape(B, S, heads, head_dim).transpose(0, 2, 1, 3)
    k = (x @ wk + bk).reshape(B, S, heads, head_dim).transpose(0, 2, 1, 3)
    v = (x @ wv + bv).reshape(B, S, heads, head_dim).transpose(0, 2, 1, 3)
    scores = jnp.einsum('bhqd,bhkd->bhqk', q, k) / math.sqrt(head_dim)
    p = jax.nn.softmax(scores, axis=-1)
    out = jnp.einsum('bhqk,bhkd->bhqd', p, v).transpose(0, 2, 1, 3)
    out = out.reshape(B, S, heads * head_dim) @ wo + bo
    return out


# ----------------------------------- demo ------------------------------------

if __name__ == "__main__":
    # Shapes implied by the module: x is (b, n, in_dim); heads divides in_dim.
    B, S, D = 2, 16, 32
    heads = 4
    head_dim = D // heads
    hd = heads * head_dim

    key = jax.random.PRNGKey(0)
    kx, k0, k1, k2, k3, k4, k5, k6, k7 = jax.random.split(key, 9)
    f32 = jnp.float32
    scale = 0.05

    x = jax.random.normal(kx, (B, S, D), f32)

    # LinearGeneral (D,) -> (heads, head_dim) weights, flattened head-major to (D, H*Dh).
    wq = scale * jax.random.normal(k0, (D, hd), f32)
    wk = scale * jax.random.normal(k1, (D, hd), f32)
    wv = scale * jax.random.normal(k2, (D, hd), f32)
    bq = 0.01 * jax.random.normal(k3, (1, hd), f32)
    bk = 0.01 * jax.random.normal(k4, (1, hd), f32)
    bv = 0.01 * jax.random.normal(k5, (1, hd), f32)
    # LinearGeneral (heads, head_dim) -> (D,) flattened to (H*Dh, D).
    wo = scale * jax.random.normal(k6, (hd, D), f32)
    bo = 0.01 * jax.random.normal(k7, (1, D), f32)

    # One-time host-side packing (scale folded, segments padded to 128-lane tiles).
    wqkv, bqkv, hd_pad = pack_qkv(wq, bq, wk, bk, wv, bv, head_dim=head_dim)

    ref = self_attention_ref(x, wq, bq, wk, bk, wv, bv, wo, bo,
                             heads=heads, head_dim=head_dim)
    ref = jax.block_until_ready(ref)

    # Default path: grid collapsed to one step (v5e / v6e).
    out = self_attention(x, wqkv, bqkv, wo, bo,
                         heads=heads, head_dim=head_dim, hd_pad=hd_pad)
    out = jax.block_until_ready(out)
    assert out.shape == (B, S, D)
    np.testing.assert_allclose(np.asarray(out), np.asarray(ref), rtol=2e-2, atol=2e-3)

    # Batch-parallel path: one batch element per grid step (v7x, 2 TCs/chip).
    out_par = self_attention(x, wqkv, bqkv, wo, bo,
                             heads=heads, head_dim=head_dim, hd_pad=hd_pad,
                             batch_block=1)
    out_par = jax.block_until_ready(out_par)
    np.testing.assert_allclose(np.asarray(out_par), np.asarray(ref), rtol=2e-2, atol=2e-3)

    print("KERNEL_OK")
</pallas_src>

<mosaic_0001>
module attributes {stable_mosaic.version = 11 : i64} {
  func.func @self_attention_kernel(%arg0: i32, %arg1: memref<2x16x32xf32, #tpu.memory_space<vmem>>, %arg2: memref<32x384xf32, #tpu.memory_space<vmem>>, %arg3: memref<1x384xf32, #tpu.memory_space<vmem>>, %arg4: memref<32x32xf32, #tpu.memory_space<vmem>>, %arg5: memref<1x32xf32, #tpu.memory_space<vmem>>, %arg6: memref<2x16x32xf32, #tpu.memory_space<vmem>>) attributes {dimension_semantics = [#tpu.dimension_semantics<parallel>], iteration_bounds = array<i64: 1>, scalar_prefetch = 0 : i64, scratch_operands = 0 : i64, tpu.core_type = #tpu.core_type<tc>, window_params = [{transform_indices = @transform_0, window_bounds = array<i64: 2, 16, 32>}, {pipeline_mode = #tpu.pipeline_mode<synchronous>, transform_indices = @transform_1, window_bounds = array<i64: 32, 384>}, {pipeline_mode = #tpu.pipeline_mode<synchronous>, transform_indices = @transform_2, window_bounds = array<i64: 1, 384>}, {pipeline_mode = #tpu.pipeline_mode<synchronous>, transform_indices = @transform_3, window_bounds = array<i64: 32, 32>}, {pipeline_mode = #tpu.pipeline_mode<synchronous>, transform_indices = @transform_4, window_bounds = array<i64: 1, 32>}, {transform_indices = @transform_5, window_bounds = array<i64: 2, 16, 32>}]} {
    %c0 = arith.constant 0 : index
    %c0_0 = arith.constant 0 : index
    %c0_1 = arith.constant 0 : index
    %0 = vector.load %arg1[%c0, %c0_0, %c0_1] : memref<2x16x32xf32, #tpu.memory_space<vmem>>, vector<2x16x32xf32>
    %1 = vector.shape_cast %0 : vector<2x16x32xf32> to vector<32x32xf32>
    %c0_2 = arith.constant 0 : index
    %c0_3 = arith.constant 0 : index
    %2 = vector.load %arg2[%c0_2, %c0_3] : memref<32x384xf32, #tpu.memory_space<vmem>>, vector<32x384xf32>
    %cst = arith.constant dense<0.000000e+00> : vector<32x384xf32>
    %3 = tpu.matmul %1, %2, %cst {dimension_numbers = #tpu.dot_dimension_numbers<[1], [0], [0], [1], [0, 0, 1, 1], [], []>} : vector<32x32xf32>, vector<32x384xf32>, vector<32x384xf32> -> vector<32x384xf32>
    %c0_4 = arith.constant 0 : index
    %c0_5 = arith.constant 0 : index
    %4 = vector.load %arg3[%c0_4, %c0_5] : memref<1x384xf32, #tpu.memory_space<vmem>>, vector<1x384xf32>
    %5 = vector.broadcast %4 : vector<1x384xf32> to vector<32x384xf32>
    %6 = arith.addf %3, %5 : vector<32x384xf32>
    %7 = vector.extract_strided_slice %6 {offsets = [0, 0], sizes = [32, 32], strides = [1, 1]} : vector<32x384xf32> to vector<32x32xf32>
    %8 = vector.extract_strided_slice %6 {offsets = [0, 128], sizes = [32, 32], strides = [1, 1]} : vector<32x384xf32> to vector<32x32xf32>
    %9 = vector.extract_strided_slice %6 {offsets = [0, 256], sizes = [32, 32], strides = [1, 1]} : vector<32x384xf32> to vector<32x32xf32>
    %10 = vector.shape_cast %7 : vector<32x32xf32> to vector<32x4x8xf32>
    %11 = tpu.transpose %10, [1, 0, 2] : vector<32x4x8xf32> -> vector<4x32x8xf32>
    %12 = vector.shape_cast %11 : vector<4x32x8xf32> to vector<8x16x8xf32>
    %13 = vector.shape_cast %8 : vector<32x32xf32> to vector<32x4x8xf32>
    %14 = tpu.transpose %13, [1, 0, 2] : vector<32x4x8xf32> -> vector<4x32x8xf32>
    %15 = vector.shape_cast %14 : vector<4x32x8xf32> to vector<8x16x8xf32>
    %16 = vector.shape_cast %9 : vector<32x32xf32> to vector<32x4x8xf32>
    %17 = tpu.transpose %16, [1, 0, 2] : vector<32x4x8xf32> -> vector<4x32x8xf32>
    %18 = vector.shape_cast %17 : vector<4x32x8xf32> to vector<8x16x8xf32>
    "tpu.trace_start"() <{level = 10 : i32, message = "gqd,gkd->gqk"}> : () -> ()
    %cst_6 = arith.constant dense<0.000000e+00> : vector<8x16x16xf32>
    %19 = tpu.matmul %12, %15, %cst_6 {dimension_numbers = #tpu.dot_dimension_numbers<[2], [2], [1], [1], [0, 0, 0, 1, 1, 1], [0], [0]>} : vector<8x16x8xf32>, vector<8x16x8xf32>, vector<8x16x16xf32> -> vector<8x16x16xf32>
    "tpu.trace_stop"() : () -> ()
    %cst_7 = arith.constant dense<0xFF800000> : vector<8x16xf32>
    %20 = vector.multi_reduction <maximumf>, %19, %cst_7 [2] : vector<8x16x16xf32> to vector<8x16xf32>
    %21 = vector.shape_cast %20 : vector<8x16xf32> to vector<8x16x1xf32>
    %22 = vector.broadcast %21 : vector<8x16x1xf32> to vector<8x16x16xf32>
    %23 = arith.subf %19, %22 : vector<8x16x16xf32>
    %24 = math.exp %23 : vector<8x16x16xf32>
    %cst_8 = arith.constant dense<0.000000e+00> : vector<8x16xf32>
    %25 = vector.multi_reduction <add>, %24, %cst_8 [2] : vector<8x16x16xf32> to vector<8x16xf32>
    %26 = vector.shape_cast %25 : vector<8x16xf32> to vector<8x16x1xf32>
    %27 = tpu.reciprocal %26 {approx = true} : vector<8x16x1xf32> -> vector<8x16x1xf32>
    %28 = vector.broadcast %27 : vector<8x16x1xf32> to vector<8x16x16xf32>
    %29 = arith.mulf %24, %28 : vector<8x16x16xf32>
    "tpu.trace_start"() <{level = 10 : i32, message = "gqk,gkd->gqd"}> : () -> ()
    %cst_9 = arith.constant dense<0.000000e+00> : vector<8x16x8xf32>
    %30 = tpu.matmul %29, %18, %cst_9 {dimension_numbers = #tpu.dot_dimension_numbers<[2], [1], [1], [2], [0, 0, 0, 1, 1, 2], [0], [0]>} : vector<8x16x16xf32>, vector<8x16x8xf32>, vector<8x16x8xf32> -> vector<8x16x8xf32>
    "tpu.trace_stop"() : () -> ()
    %31 = vector.shape_cast %30 : vector<8x16x8xf32> to vector<4x32x8xf32>
    %32 = tpu.transpose %31, [1, 0, 2] : vector<4x32x8xf32> -> vector<32x4x8xf32>
    %33 = vector.shape_cast %32 : vector<32x4x8xf32> to vector<32x32xf32>
    %c0_10 = arith.constant 0 : index
    %c0_11 = arith.constant 0 : index
    %34 = vector.load %arg4[%c0_10, %c0_11] : memref<32x32xf32, #tpu.memory_space<vmem>>, vector<32x32xf32>
    %cst_12 = arith.constant dense<0.000000e+00> : vector<32x32xf32>
    %35 = tpu.matmul %33, %34, %cst_12 {dimension_numbers = #tpu.dot_dimension_numbers<[1], [0], [0], [1], [0, 0, 1, 1], [], []>} : vector<32x32xf32>, vector<32x32xf32>, vector<32x32xf32> -> vector<32x32xf32>
    %c0_13 = arith.constant 0 : index
    %c0_14 = arith.constant 0 : index
    %36 = vector.load %arg5[%c0_13, %c0_14] : memref<1x32xf32, #tpu.memory_space<vmem>>, vector<1x32xf32>
    %37 = vector.broadcast %36 : vector<1x32xf32> to vector<32x32xf32>
    %38 = arith.addf %35, %37 : vector<32x32xf32>
    %39 = vector.shape_cast %38 : vector<32x32xf32> to vector<2x16x32xf32>
    %c0_15 = arith.constant 0 : index
    %c0_16 = arith.constant 0 : index
    %c0_17 = arith.constant 0 : index
    %40 = vector.load %arg6[%c0_15, %c0_16, %c0_17] : memref<2x16x32xf32, #tpu.memory_space<vmem>>, vector<2x16x32xf32>
    tpu.vector_store %arg6[%c0_15, %c0_16, %c0_17], %39 {strides = array<i32>} : memref<2x16x32xf32, #tpu.memory_space<vmem>>, vector<2x16x32xf32>,
    return
  }
  func.func @transform_0(%arg0: i32) -> (i32, i32, i32) {
    %c0_i32 = arith.constant 0 : i32
    %c0_i32_0 = arith.constant 0 : i32
    %c0_i32_1 = arith.constant 0 : i32
    return %arg0, %c0_i32, %c0_i32_0 : i32, i32, i32
  }
  func.func @transform_1(%arg0: i32) -> (i32, i32) {
    %c0_i32 = arith.constant 0 : i32
    %c0_i32_0 = arith.constant 0 : i32
    %c0_i32_1 = arith.constant 0 : i32
    return %c0_i32, %c0_i32_0 : i32, i32
  }
  func.func @transform_2(%arg0: i32) -> (i32, i32) {
    %c0_i32 = arith.constant 0 : i32
    %c0_i32_0 = arith.constant 0 : i32
    %c0_i32_1 = arith.constant 0 : i32
    return %c0_i32, %c0_i32_0 : i32, i32
  }
  func.func @transform_3(%arg0: i32) -> (i32, i32) {
    %c0_i32 = arith.constant 0 : i32
    %c0_i32_0 = arith.constant 0 : i32
    %c0_i32_1 = arith.constant 0 : i32
    return %c0_i32, %c0_i32_0 : i32, i32
  }
  func.func @transform_4(%arg0: i32) -> (i32, i32) {
    %c0_i32 = arith.constant 0 : i32
    %c0_i32_0 = arith.constant 0 : i32
    %c0_i32_1 = arith.constant 0 : i32
    return %c0_i32, %c0_i32_0 : i32, i32
  }
  func.func @transform_5(%arg0: i32) -> (i32, i32, i32) {
    %c0_i32 = arith.constant 0 : i32
    %c0_i32_0 = arith.constant 0 : i32
    %c0_i32_1 = arith.constant 0 : i32
    return %arg0, %c0_i32, %c0_i32_0 : i32, i32, i32
  }
}

</mosaic_0001>

<llo_original>
// kernel: tpu_custom_call.1
$region0: #{tpu_custom_call.1}
  #allocation0 [shape = 'u32[]', space=smem, size = 0x4, offset = 0x4, fixed_abs, tag = 'smem constant byte address 0x4 - core index']
  #allocation1 [shape = 'u32[72,128]{1,0:T(1,128)}', space=vmem, size = 0x9000, scoped, tag = 'internal scratch']
  %s0 = inlined_call_operand.hbm [shape: f32[2,16,32], index: 0, kind: input, shape index: {}]
  %s1 = inlined_call_operand.hbm [shape: f32[32,384], index: 1, kind: input, shape index: {}]
  %s2 = inlined_call_operand.hbm [shape: f32[1,384], index: 2, kind: input, shape index: {}]
  %s3 = inlined_call_operand.hbm [shape: f32[32,32], index: 3, kind: input, shape index: {}]
  %s4 = inlined_call_operand.vmem [shape: f32[1,32], index: 4, kind: input, shape index: {}]
  %s5 = inlined_call_operand.hbm [shape: f32[2,16,32], index: 5, kind: output, shape index: {}]
  %s6 = sld [smem:[#allocation0]]
  $region46: #{tpu_custom_call.1} parent=0
    _
  %s8 = ssub.s32 1, %s6
  %s9 = scalar_select 0, %s8, %s6
  $region1: #{tpu_custom_call.1} parent=0
    #allocation2 [shape = 'u8[16384]{0}', space=vmem, size = 0x4000, scoped, tag = 'input window, operand 0, single buffered']
    #allocation3 [shape = 's32[1]{0}', space=sflag, size = 0x4, scoped, tag = 'scoped memory for tpu_custom_call.1']
    #allocation4 [shape = 's32[1]{0}', space=sflag, size = 0x4, scoped, tag = 'scoped memory for tpu_custom_call.1']
    #allocation5 [shape = 'u8[49152]{0}', space=vmem, size = 0xc000, scoped, tag = 'input window, operand 1, single buffered']
    #allocation6 [shape = 's32[1]{0}', space=sflag, size = 0x4, scoped, tag = 'scoped memory for tpu_custom_call.1']
    #allocation7 [shape = 'u8[1536]{0}', space=vmem, size = 0x800, scoped, tag = 'input window, operand 2, single buffered']
    #allocation8 [shape = 'u8[16384]{0}', space=vmem, size = 0x4000, scoped, tag = 'input window, operand 3, single buffered']
    #allocation9 [shape = 's32[1]{0}', space=sflag, size = 0x4, scoped, tag = 'scoped memory for tpu_custom_call.1']
    #allocation10 [shape = 'u8[16384]{0}', space=vmem, size = 0x4000, scoped, tag = 'output window, operand 0, single buffered']
    %10 = vsyncpa [#allocation3], 0
    %11 = vsyncpa [#allocation6], 0
    %12 = vsyncpa [#allocation9], 0
    %13 = vsyncpa [#allocation4], 0
    // Predicated region
    $region2: #{tpu_custom_call.1} parent=1 // pred_check
      _
    $region3: #{tpu_custom_call.1} parent=1 // pred_check_branch
      %15 = sbr.rel (0) target = $region5
    $region4: #{tpu_custom_call.1} parent=1 // pred_region
      %17 = vsyncadd [#allocation3], 0
      %s18 = sshll.u32 %s0, 4
      %s19 = int_to_ptr.hbm [resolvable:$true] %s18
      %s20 = sshll.u32 [#allocation2], 4
      %s21 = int_to_ptr.vmem [resolvable:$true] %s20
      %26 = dma.hbm_to_vmem [thread:$0]  %s19, 512, %s21, [#allocation3], 128, 128, 8
    $region5: #{tpu_custom_call.1} parent=1 // pred_fallthru
      _
    // Predicated region
    $region6: #{tpu_custom_call.1} parent=1 // pred_check
      _
    $region7: #{tpu_custom_call.1} parent=1 // pred_check_branch
      %28 = sbr.rel (0) target = $region9
    $region8: #{tpu_custom_call.1} parent=1 // pred_region
      %30 = vsyncadd [#allocation6], 0
      %s31 = sshll.u32 %s1, 4
      %s32 = int_to_ptr.hbm [resolvable:$true] %s31
      %s33 = sshll.u32 [#allocation5], 4
      %s34 = int_to_ptr.vmem [resolvable:$true] %s33
      %39 = dma.hbm_to_vmem [thread:$0]  %s32, 1536, %s34, [#allocation6], 384, 384, 24
    $region9: #{tpu_custom_call.1} parent=1 // pred_fallthru
      _
    // Predicated region
    $region10: #{tpu_custom_call.1} parent=1 // pred_check
      _
    $region11: #{tpu_custom_call.1} parent=1 // pred_check_branch
      %41 = sbr.rel (0) target = $region13
    $region12: #{tpu_custom_call.1} parent=1 // pred_region
      %43 = vsyncadd [#allocation6], 0
      %s45 = sshll.u32 %s2, 4
      %s46 = int_to_ptr.hbm [resolvable:$true] %s45
      %s47 = sshll.u32 [#allocation7], 4
      %s48 = int_to_ptr.vmem [resolvable:$true] %s47
      %50 = dma.hbm_to_vmem [thread:$0]  %s46, 48, %s48, [#allocation6]
    $region13: #{tpu_custom_call.1} parent=1 // pred_fallthru
      _
    // Predicated region
    $region14: #{tpu_custom_call.1} parent=1 // pred_check
      _
    $region15: #{tpu_custom_call.1} parent=1 // pred_check_branch
      %52 = sbr.rel (0) target = $region17
    $region16: #{tpu_custom_call.1} parent=1 // pred_region
      %54 = vsyncadd [#allocation9], 0
      %s55 = sshll.u32 %s3, 4
      %s56 = int_to_ptr.hbm [resolvable:$true] %s55
      %s57 = sshll.u32 [#allocation8], 4
      %s58 = int_to_ptr.vmem [resolvable:$true] %s57
      %63 = dma.hbm_to_vmem [thread:$0]  %s56, 512, %s58, [#allocation9], 128, 128, 8
    $region17: #{tpu_custom_call.1} parent=1 // pred_fallthru
      _
    // Predicated region
    $region18: #{tpu_custom_call.1} parent=1 // pred_check
      _
    $region19: #{tpu_custom_call.1} parent=1 // pred_check_branch
      %65 = sbr.rel (0) target = $region21
    $region20: #{tpu_custom_call.1} parent=1 // pred_region
      _
    $region21: #{tpu_custom_call.1} parent=1 // pred_fallthru
      _
    // Predicated region
    $region22: #{tpu_custom_call.1} parent=1 // pred_check
      _
    $region23: #{tpu_custom_call.1} parent=1 // pred_check_branch
      %67 = sbr.rel (0) target = $region25
    $region24: #{tpu_custom_call.1} parent=1 // pred_region
      %69 = dma.done [#allocation3], 512
    $region25: #{tpu_custom_call.1} parent=1 // pred_fallthru
      _
    // Predicated region
    $region26: #{tpu_custom_call.1} parent=1 // pred_check
      _
    $region27: #{tpu_custom_call.1} parent=1 // pred_check_branch
      %71 = sbr.rel (0) target = $region29
    $region28: #{tpu_custom_call.1} parent=1 // pred_region
      %73 = dma.done [#allocation6], 1536
    $region29: #{tpu_custom_call.1} parent=1 // pred_fallthru
      _
    // Predicated region
    $region30: #{tpu_custom_call.1} parent=1 // pred_check
      _
    $region31: #{tpu_custom_call.1} parent=1 // pred_check_branch
      %75 = sbr.rel (0) target = $region33
    $region32: #{tpu_custom_call.1} parent=1 // pred_region
      %77 = dma.done [#allocation6], 48
    $region33: #{tpu_custom_call.1} parent=1 // pred_fallthru
      _
    // Predicated region
    $region34: #{tpu_custom_call.1} parent=1 // pred_check
      _
    $region35: #{tpu_custom_call.1} parent=1 // pred_check_branch
      %79 = sbr.rel (0) target = $region37
    $region36: #{tpu_custom_call.1} parent=1 // pred_region
      %81 = dma.done [#allocation9], 512
    $region37: #{tpu_custom_call.1} parent=1 // pred_fallthru
      _
    %v82 = vld [vmem:[#allocation2] sm:$0xff]
    %v83 = vld [vmem:[#allocation2 + $0x8] sm:$0xff]
    %v84 = vld [vmem:[#allocation2 + $0x10] sm:$0xff]
    %v85 = vld [vmem:[#allocation2 + $0x18] sm:$0xff]
    %v86 = vld [vmem:[#allocation5] sm:$0xff]
    %v87 = vld [vmem:[#allocation5 + $0x8] sm:$0xff]
    %v88 = vld [vmem:[#allocation5 + $0x10] sm:$0xff]
    %v89 = vld [vmem:[#allocation5 + $0x18] sm:$0xff]
    %v90 = vld [vmem:[#allocation5 + $0x20] sm:$0xff]
    %v91 = vld [vmem:[#allocation5 + $0x28] sm:$0xff]
    %v92 = vld [vmem:[#allocation5 + $0x30] sm:$0xff]
    %v93 = vld [vmem:[#allocation5 + $0x38] sm:$0xff]
    %v94 = vld [vmem:[#allocation5 + $0x40] sm:$0xff]
    %v95 = vld [vmem:[#allocation5 + $0x48] sm:$0xff]
    %v96 = vld [vmem:[#allocation5 + $0x50] sm:$0xff]
    %v97 = vld [vmem:[#allocation5 + $0x58] sm:$0xff]
    %v98 = vld [vmem:[#allocation7] sm:$0x7]
    %v100 = vperm.slane %v98, 0
    %v101 = vperm.slane %v98, 1
    %v102 = vperm.slane %v98, 2
    %vm106 = vcmask 261120
    %v108 = vsel %vm106, %v82, 0
    %v111 = vsel %vm106, %v83, 0
    %v114 = vsel %vm106, %v84, 0
    %v117 = vsel %vm106, %v85, 0
    %119 = vmatpush.msra.mxu0 0.0
    %120 = vmatpush.msra.mxu0 0.0
    %121 = vmatpush.msra.mxu0 0.0
    %122 = vmatpush.msra.mxu0 0.0
    %123 = vmatpush.msra.mxu0 0.0
    %124 = vmatpush.msra.mxu0 0.0
    %125 = vmatpush.msra.mxu0 0.0
    %126 = vmatpush.msra.mxu0 0.0
    %127 = vmatpush.msra.mxu0 0.0
    %128 = vmatpush.msra.mxu0 0.0
    %129 = vmatpush.msra.mxu0 0.0
    %130 = vmatpush.msra.mxu0 0.0
    %131 = vmatpush.msra.mxu0 %v95
    %132 = vmatpush.msra.mxu0 %v92
    %133 = vmatpush.msra.mxu0 %v89
    %134 = vmatpush.msra.mxu0 %v86
    %135 = vmatmul.f32.gmra.mxu0 %v108
    %v136 = vpop.f32.mrf.mxu0
    %v137 = vadd.f32 %v100, %v136
    %138 = vmatmul.f32.gmra.mxu0 %v111
    %v139 = vpop.f32.mrf.mxu0
    %v140 = vadd.f32 %v100, %v139
    %141 = vmatmul.f32.gmra.mxu0 %v114
    %v142 = vpop.f32.mrf.mxu0
    %v143 = vadd.f32 %v100, %v142
    %144 = vmatmul.f32.gmra.mxu0 %v117
    %v145 = vpop.f32.mrf.mxu0
    %v146 = vadd.f32 %v100, %v145
    %147 = vdwg.mxu0
    %148 = vmatpush.msra.mxu0 0.0
    %149 = vmatpush.msra.mxu0 0.0
    %150 = vmatpush.msra.mxu0 0.0
    %151 = vmatpush.msra.mxu0 0.0
    %152 = vmatpush.msra.mxu0 0.0
    %153 = vmatpush.msra.mxu0 0.0
    %154 = vmatpush.msra.mxu0 0.0
    %155 = vmatpush.msra.mxu0 0.0
    %156 = vmatpush.msra.mxu0 0.0
    %157 = vmatpush.msra.mxu0 0.0
    %158 = vmatpush.msra.mxu0 0.0
    %159 = vmatpush.msra.mxu0 0.0
    %160 = vmatpush.msra.mxu0 %v96
    %161 = vmatpush.msra.mxu0 %v93
    %162 = vmatpush.msra.mxu0 %v90
    %163 = vmatpush.msra.mxu0 %v87
    %164 = vmatmul.f32.gmra.mxu0 %v108
    %v165 = vpop.f32.mrf.mxu0
    %v166 = vadd.f32 %v101, %v165
    %167 = vmatmul.f32.gmra.mxu0 %v111
    %v168 = vpop.f32.mrf.mxu0
    %v169 = vadd.f32 %v101, %v168
    %170 = vmatmul.f32.gmra.mxu0 %v114
    %v171 = vpop.f32.mrf.mxu0
    %v172 = vadd.f32 %v101, %v171
    %173 = vmatmul.f32.gmra.mxu0 %v117
    %v174 = vpop.f32.mrf.mxu0
    %v175 = vadd.f32 %v101, %v174
    %176 = vdwg.mxu0
    %177 = vmatpush.msra.mxu0 0.0
    %178 = vmatpush.msra.mxu0 0.0
    %179 = vmatpush.msra.mxu0 0.0
    %180 = vmatpush.msra.mxu0 0.0
    %181 = vmatpush.msra.mxu0 0.0
    %182 = vmatpush.msra.mxu0 0.0
    %183 = vmatpush.msra.mxu0 0.0
    %184 = vmatpush.msra.mxu0 0.0
    %185 = vmatpush.msra.mxu0 0.0
    %186 = vmatpush.msra.mxu0 0.0
    %187 = vmatpush.msra.mxu0 0.0
    %188 = vmatpush.msra.mxu0 0.0
    %189 = vmatpush.msra.mxu0 %v97
    %190 = vmatpush.msra.mxu0 %v94
    %191 = vmatpush.msra.mxu0 %v91
    %192 = vmatpush.msra.mxu0 %v88
    %193 = vmatmul.f32.gmra.mxu0 %v108
    %v194 = vpop.f32.mrf.mxu0
    %v195 = vadd.f32 %v102, %v194
    %196 = vmatmul.f32.gmra.mxu0 %v111
    %v197 = vpop.f32.mrf.mxu0
    %v198 = vadd.f32 %v102, %v197
    %199 = vmatmul.f32.gmra.mxu0 %v114
    %v200 = vpop.f32.mrf.mxu0
    %v201 = vadd.f32 %v102, %v200
    %202 = vmatmul.f32.gmra.mxu0 %v117
    %v203 = vpop.f32.mrf.mxu0
    %v204 = vadd.f32 %v102, %v203
    %205 = vdwg.mxu0
    %210 = vrot.lane.b32.xlu0 %v137, 120
    %v211 = vpop.permute.xlu0 %210
    %212 = vrot.lane.b32.xlu0 %v140, 120
    %v213 = vpop.permute.xlu0 %212
    %214 = vrot.lane.b32.xlu0 %v143, 120
    %v215 = vpop.permute.xlu0 %214
    %216 = vrot.lane.b32.xlu0 %v146, 120
    %v217 = vpop.permute.xlu0 %216
    %222 = vrot.lane.b32.xlu0 %v137, 112
    %v223 = vpop.permute.xlu0 %222
    %224 = vrot.lane.b32.xlu0 %v140, 112
    %v225 = vpop.permute.xlu0 %224
    %226 = vrot.lane.b32.xlu0 %v143, 112
    %v227 = vpop.permute.xlu0 %226
    %228 = vrot.lane.b32.xlu0 %v146, 112
    %v229 = vpop.permute.xlu0 %228
    %234 = vrot.lane.b32.xlu0 %v137, 104
    %v235 = vpop.permute.xlu0 %234
    %236 = vrot.lane.b32.xlu0 %v140, 104
    %v237 = vpop.permute.xlu0 %236
    %238 = vrot.lane.b32.xlu0 %v143, 104
    %v239 = vpop.permute.xlu0 %238
    %240 = vrot.lane.b32.xlu0 %v146, 104
    %v241 = vpop.permute.xlu0 %240
    %v246 = vrot.slane %v223, 4
    %vm247 = vcmask 1047556
    %v248 = vsel %vm247, %v246, %v137
    %v249 = vrot.slane %v137, 4
    %v250 = vsel %vm247, %v223, %v249
    %v252 = vunpack.c.l.s4 1983009808
    %v253 = vunpack.c.0.s8 %v252
    %v254 = vperm.slane %v248, %v253
    %v256 = vunpack.c.l.s4 1983009808
    %v257 = vunpack.c.0.s8 %v256
    %v258 = vperm.slane %v250, %v257
    %v259 = vrot.slane %v235, 4
    %v260 = vsel %vm247, %v259, %v211
    %v261 = vrot.slane %v211, 4
    %v262 = vsel %vm247, %v235, %v261
    %v264 = vunpack.c.l.s4 1983009808
    %v265 = vunpack.c.0.s8 %v264
    %v266 = vperm.slane %v260, %v265
    %v268 = vunpack.c.l.s4 1983009808
    %v269 = vunpack.c.0.s8 %v268
    %v270 = vperm.slane %v262, %v269
    %v271 = vrot.slane %v266, 4
    %v272 = vsel %vm247, %v271, %v254
    %v273 = vrot.slane %v254, 4
    %v274 = vsel %vm247, %v266, %v273
    %v276 = vunpack.c.l.s4 1934713408
    %v277 = vunpack.c.0.s8 %v276
    %v278 = vperm.slane %v272, %v277
    %v280 = vunpack.c.l.s4 1934713408
    %v281 = vunpack.c.0.s8 %v280
    %v282 = vperm.slane %v274, %v281
    %v283 = vrot.slane %v270, 4
    %v284 = vsel %vm247, %v283, %v258
    %v285 = vrot.slane %v258, 4
    %v286 = vsel %vm247, %v270, %v285
    %v288 = vunpack.c.l.s4 1934713408
    %v289 = vunpack.c.0.s8 %v288
    %v290 = vperm.slane %v284, %v289
    %v292 = vunpack.c.l.s4 1934713408
    %v293 = vunpack.c.0.s8 %v292
    %v294 = vperm.slane %v286, %v293
    %v295 = vrot.slane %v278, 4
    %v296 = vsel %vm247, 0.0, %v295
    %v297 = vrot.slane %v282, 4
    %v298 = vsel %vm247, 0.0, %v297
    %v299 = vrot.slane %v290, 4
    %v300 = vsel %vm247, 0.0, %v299
    %v301 = vrot.slane %v294, 4
    %v302 = vsel %vm247, 0.0, %v301
    %v303 = vrot.slane %v225, 4
    %v304 = vsel %vm247, %v303, %v140
    %v305 = vrot.slane %v140, 4
    %v306 = vsel %vm247, %v225, %v305
    %v308 = vunpack.c.l.s4 1983009808
    %v309 = vunpack.c.0.s8 %v308
    %v310 = vperm.slane %v304, %v309
    %v312 = vunpack.c.l.s4 1983009808
    %v313 = vunpack.c.0.s8 %v312
    %v314 = vperm.slane %v306, %v313
    %v315 = vrot.slane %v237, 4
    %v316 = vsel %vm247, %v315, %v213
    %v317 = vrot.slane %v213, 4
    %v318 = vsel %vm247, %v237, %v317
    %v320 = vunpack.c.l.s4 1983009808
    %v321 = vunpack.c.0.s8 %v320
    %v322 = vperm.slane %v316, %v321
    %v324 = vunpack.c.l.s4 1983009808
    %v325 = vunpack.c.0.s8 %v324
    %v326 = vperm.slane %v318, %v325
    %v327 = vrot.slane %v322, 4
    %v328 = vsel %vm247, %v327, %v310
    %v329 = vrot.slane %v310, 4
    %v330 = vsel %vm247, %v322, %v329
    %v332 = vunpack.c.l.s4 1934713408
    %v333 = vunpack.c.0.s8 %v332
    %v334 = vperm.slane %v328, %v333
    %v336 = vunpack.c.l.s4 1934713408
    %v337 = vunpack.c.0.s8 %v336
    %v338 = vperm.slane %v330, %v337
    %v339 = vrot.slane %v326, 4
    %v340 = vsel %vm247, %v339, %v314
    %v341 = vrot.slane %v314, 4
    %v342 = vsel %vm247, %v326, %v341
    %v344 = vunpack.c.l.s4 1934713408
    %v345 = vunpack.c.0.s8 %v344
    %v346 = vperm.slane %v340, %v345
    %v348 = vunpack.c.l.s4 1934713408
    %v349 = vunpack.c.0.s8 %v348
    %v350 = vperm.slane %v342, %v349
    %v351 = vrot.slane %v334, 4
    %v352 = vsel %vm247, 0.0, %v351
    %v353 = vrot.slane %v338, 4
    %v354 = vsel %vm247, 0.0, %v353
    %v355 = vrot.slane %v346, 4
    %v356 = vsel %vm247, 0.0, %v355
    %v357 = vrot.slane %v350, 4
    %v358 = vsel %vm247, 0.0, %v357
    %v359 = vrot.slane %v227, 4
    %v360 = vsel %vm247, %v359, %v143
    %v361 = vrot.slane %v143, 4
    %v362 = vsel %vm247, %v227, %v361
    %v364 = vunpack.c.l.s4 1983009808
    %v365 = vunpack.c.0.s8 %v364
    %v366 = vperm.slane %v360, %v365
    %v368 = vunpack.c.l.s4 1983009808
    %v369 = vunpack.c.0.s8 %v368
    %v370 = vperm.slane %v362, %v369
    %v371 = vrot.slane %v239, 4
    %v372 = vsel %vm247, %v371, %v215
    %v373 = vrot.slane %v215, 4
    %v374 = vsel %vm247, %v239, %v373
    %v376 = vunpack.c.l.s4 1983009808
    %v377 = vunpack.c.0.s8 %v376
    %v378 = vperm.slane %v372, %v377
    %v380 = vunpack.c.l.s4 1983009808
    %v381 = vunpack.c.0.s8 %v380
    %v382 = vperm.slane %v374, %v381
    %v383 = vrot.slane %v378, 4
    %v384 = vsel %vm247, %v383, %v366
    %v385 = vrot.slane %v366, 4
    %v386 = vsel %vm247, %v378, %v385
    %v388 = vunpack.c.l.s4 1934713408
    %v389 = vunpack.c.0.s8 %v388
    %v390 = vperm.slane %v384, %v389
    %v392 = vunpack.c.l.s4 1934713408
    %v393 = vunpack.c.0.s8 %v392
    %v394 = vperm.slane %v386, %v393
    %v395 = vrot.slane %v382, 4
    %v396 = vsel %vm247, %v395, %v370
    %v397 = vrot.slane %v370, 4
    %v398 = vsel %vm247, %v382, %v397
    %v400 = vunpack.c.l.s4 1934713408
    %v401 = vunpack.c.0.s8 %v400
    %v402 = vperm.slane %v396, %v401
    %v404 = vunpack.c.l.s4 1934713408
    %v405 = vunpack.c.0.s8 %v404
    %v406 = vperm.slane %v398, %v405
    %v407 = vrot.slane %v390, 4
    %v408 = vsel %vm247, 0.0, %v407
    %v409 = vrot.slane %v394, 4
    %v410 = vsel %vm247, 0.0, %v409
    %v411 = vrot.slane %v402, 4
    %v412 = vsel %vm247, 0.0, %v411
    %v413 = vrot.slane %v406, 4
    %v414 = vsel %vm247, 0.0, %v413
    %v415 = vrot.slane %v229, 4
    %v416 = vsel %vm247, %v415, %v146
    %v417 = vrot.slane %v146, 4
    %v418 = vsel %vm247, %v229, %v417
    %v420 = vunpack.c.l.s4 1983009808
    %v421 = vunpack.c.0.s8 %v420
    %v422 = vperm.slane %v416, %v421
    %v424 = vunpack.c.l.s4 1983009808
    %v425 = vunpack.c.0.s8 %v424
    %v426 = vperm.slane %v418, %v425
    %v427 = vrot.slane %v241, 4
    %v428 = vsel %vm247, %v427, %v217
    %v429 = vrot.slane %v217, 4
    %v430 = vsel %vm247, %v241, %v429
    %v432 = vunpack.c.l.s4 1983009808
    %v433 = vunpack.c.0.s8 %v432
    %v434 = vperm.slane %v428, %v433
    %v436 = vunpack.c.l.s4 1983009808
    %v437 = vunpack.c.0.s8 %v436
    %v438 = vperm.slane %v430, %v437
    %v439 = vrot.slane %v434, 4
    %v440 = vsel %vm247, %v439, %v422
    %v441 = vrot.slane %v422, 4
    %v442 = vsel %vm247, %v434, %v441
    %v444 = vunpack.c.l.s4 1934713408
    %v445 = vunpack.c.0.s8 %v444
    %v446 = vperm.slane %v440, %v445
    %v448 = vunpack.c.l.s4 1934713408
    %v449 = vunpack.c.0.s8 %v448
    %v450 = vperm.slane %v442, %v449
    %v451 = vrot.slane %v438, 4
    %v452 = vsel %vm247, %v451, %v426
    %v453 = vrot.slane %v426, 4
    %v454 = vsel %vm247, %v438, %v453
    %v456 = vunpack.c.l.s4 1934713408
    %v457 = vunpack.c.0.s8 %v456
    %v458 = vperm.slane %v452, %v457
    %v460 = vunpack.c.l.s4 1934713408
    %v461 = vunpack.c.0.s8 %v460
    %v462 = vperm.slane %v454, %v461
    %v463 = vrot.slane %v446, 4
    %v464 = vsel %vm247, 0.0, %v463
    %v465 = vrot.slane %v450, 4
    %v466 = vsel %vm247, 0.0, %v465
    %v467 = vrot.slane %v458, 4
    %v468 = vsel %vm247, 0.0, %v467
    %v469 = vrot.slane %v462, 4
    %v470 = vsel %vm247, 0.0, %v469
    %v471 = vsel %vm247, %v297, %v278
    %v473 = vunpack.c.l.s4 1983009808
    %v474 = vunpack.c.0.s8 %v473
    %v475 = vperm.slane %v471, %v474
    %v476 = vrot.slane %v298, 4
    %v477 = vsel %vm247, %v476, %v296
    %v479 = vunpack.c.l.s4 1983009808
    %v480 = vunpack.c.0.s8 %v479
    %v481 = vperm.slane %v477, %v480
    %v482 = vsel %vm247, %v301, %v290
    %v484 = vunpack.c.l.s4 1983009808
    %v485 = vunpack.c.0.s8 %v484
    %v486 = vperm.slane %v482, %v485
    %v487 = vrot.slane %v302, 4
    %v488 = vsel %vm247, %v487, %v300
    %v490 = vunpack.c.l.s4 1983009808
    %v491 = vunpack.c.0.s8 %v490
    %v492 = vperm.slane %v488, %v491
    %v493 = vrot.slane %v481, 4
    %v494 = vsel %vm247, %v493, %v475
    %v495 = vrot.slane %v475, 4
    %v496 = vsel %vm247, %v481, %v495
    %v498 = vunpack.c.l.s4 1934713408
    %v499 = vunpack.c.0.s8 %v498
    %v500 = vperm.slane %v494, %v499
    %v502 = vunpack.c.l.s4 1934713408
    %v503 = vunpack.c.0.s8 %v502
    %v504 = vperm.slane %v496, %v503
    %v505 = vrot.slane %v492, 4
    %v506 = vsel %vm247, %v505, %v486
    %v507 = vrot.slane %v486, 4
    %v508 = vsel %vm247, %v492, %v507
    %v510 = vunpack.c.l.s4 1934713408
    %v511 = vunpack.c.0.s8 %v510
    %v512 = vperm.slane %v506, %v511
    %v514 = vunpack.c.l.s4 1934713408
    %v515 = vunpack.c.0.s8 %v514
    %v516 = vperm.slane %v508, %v515
    %v517 = vrot.slane %v512, 4
    %v518 = vsel %vm247, %v517, %v500
    %v519 = vrot.slane %v500, 4
    %v520 = vsel %vm247, %v512, %v519
    %v521 = vrot.slane %v516, 4
    %v522 = vsel %vm247, %v521, %v504
    %v523 = vrot.slane %v504, 4
    %v524 = vsel %vm247, %v516, %v523
    %v525 = vsel %vm247, %v353, %v334
    %v527 = vunpack.c.l.s4 1983009808
    %v528 = vunpack.c.0.s8 %v527
    %v529 = vperm.slane %v525, %v528
    %v530 = vrot.slane %v354, 4
    %v531 = vsel %vm247, %v530, %v352
    %v533 = vunpack.c.l.s4 1983009808
    %v534 = vunpack.c.0.s8 %v533
    %v535 = vperm.slane %v531, %v534
    %v536 = vsel %vm247, %v357, %v346
    %v538 = vunpack.c.l.s4 1983009808
    %v539 = vunpack.c.0.s8 %v538
    %v540 = vperm.slane %v536, %v539
    %v541 = vrot.slane %v358, 4
    %v542 = vsel %vm247, %v541, %v356
    %v544 = vunpack.c.l.s4 1983009808
    %v545 = vunpack.c.0.s8 %v544
    %v546 = vperm.slane %v542, %v545
    %v547 = vrot.slane %v535, 4
    %v548 = vsel %vm247, %v547, %v529
    %v549 = vrot.slane %v529, 4
    %v550 = vsel %vm247, %v535, %v549
    %v552 = vunpack.c.l.s4 1934713408
    %v553 = vunpack.c.0.s8 %v552
    %v554 = vperm.slane %v548, %v553
    %v556 = vunpack.c.l.s4 1934713408
    %v557 = vunpack.c.0.s8 %v556
    %v558 = vperm.slane %v550, %v557
    %v559 = vrot.slane %v546, 4
    %v560 = vsel %vm247, %v559, %v540
    %v561 = vrot.slane %v540, 4
    %v562 = vsel %vm247, %v546, %v561
    %v564 = vunpack.c.l.s4 1934713408
    %v565 = vunpack.c.0.s8 %v564
    %v566 = vperm.slane %v560, %v565
    %v568 = vunpack.c.l.s4 1934713408
    %v569 = vunpack.c.0.s8 %v568
    %v570 = vperm.slane %v562, %v569
    %v571 = vrot.slane %v566, 4
    %v572 = vsel %vm247, %v571, %v554
    %v573 = vrot.slane %v554, 4
    %v574 = vsel %vm247, %v566, %v573
    %v575 = vrot.slane %v570, 4
    %v576 = vsel %vm247, %v575, %v558
    %v577 = vrot.slane %v558, 4
    %v578 = vsel %vm247, %v570, %v577
    %v579 = vsel %vm247, %v409, %v390
    %v581 = vunpack.c.l.s4 1983009808
    %v582 = vunpack.c.0.s8 %v581
    %v583 = vperm.slane %v579, %v582
    %v584 = vrot.slane %v410, 4
    %v585 = vsel %vm247, %v584, %v408
    %v587 = vunpack.c.l.s4 1983009808
    %v588 = vunpack.c.0.s8 %v587
    %v589 = vperm.slane %v585, %v588
    %v590 = vsel %vm247, %v413, %v402
    %v592 = vunpack.c.l.s4 1983009808
    %v593 = vunpack.c.0.s8 %v592
    %v594 = vperm.slane %v590, %v593
    %v595 = vrot.slane %v414, 4
    %v596 = vsel %vm247, %v595, %v412
    %v598 = vunpack.c.l.s4 1983009808
    %v599 = vunpack.c.0.s8 %v598
    %v600 = vperm.slane %v596, %v599
    %v601 = vrot.slane %v589, 4
    %v602 = vsel %vm247, %v601, %v583
    %v603 = vrot.slane %v583, 4
    %v604 = vsel %vm247, %v589, %v603
    %v606 = vunpack.c.l.s4 1934713408
    %v607 = vunpack.c.0.s8 %v606
    %v608 = vperm.slane %v602, %v607
    %v610 = vunpack.c.l.s4 1934713408
    %v611 = vunpack.c.0.s8 %v610
    %v612 = vperm.slane %v604, %v611
    %v613 = vrot.slane %v600, 4
    %v614 = vsel %vm247, %v613, %v594
    %v615 = vrot.slane %v594, 4
    %v616 = vsel %vm247, %v600, %v615
    %v618 = vunpack.c.l.s4 1934713408
    %v619 = vunpack.c.0.s8 %v618
    %v620 = vperm.slane %v614, %v619
    %v622 = vunpack.c.l.s4 1934713408
    %v623 = vunpack.c.0.s8 %v622
    %v624 = vperm.slane %v616, %v623
    %v625 = vrot.slane %v620, 4
    %v626 = vsel %vm247, %v625, %v608
    %v627 = vrot.slane %v608, 4
    %v628 = vsel %vm247, %v620, %v627
    %v629 = vrot.slane %v624, 4
    %v630 = vsel %vm247, %v629, %v612
    %v631 = vrot.slane %v612, 4
    %v632 = vsel %vm247, %v624, %v631
    %v633 = vsel %vm247, %v465, %v446
    %v635 = vunpack.c.l.s4 1983009808
    %v636 = vunpack.c.0.s8 %v635
    %v637 = vperm.slane %v633, %v636
    %v638 = vrot.slane %v466, 4
    %v639 = vsel %vm247, %v638, %v464
    %v641 = vunpack.c.l.s4 1983009808
    %v642 = vunpack.c.0.s8 %v641
    %v643 = vperm.slane %v639, %v642
    %v644 = vsel %vm247, %v469, %v458
    %v646 = vunpack.c.l.s4 1983009808
    %v647 = vunpack.c.0.s8 %v646
    %v648 = vperm.slane %v644, %v647
    %v649 = vrot.slane %v470, 4
    %v650 = vsel %vm247, %v649, %v468
    %v652 = vunpack.c.l.s4 1983009808
    %v653 = vunpack.c.0.s8 %v652
    %v654 = vperm.slane %v650, %v653
    %v655 = vrot.slane %v643, 4
    %v656 = vsel %vm247, %v655, %v637
    %v657 = vrot.slane %v637, 4
    %v658 = vsel %vm247, %v643, %v657
    %v660 = vunpack.c.l.s4 1934713408
    %v661 = vunpack.c.0.s8 %v660
    %v662 = vperm.slane %v656, %v661
    %v664 = vunpack.c.l.s4 1934713408
    %v665 = vunpack.c.0.s8 %v664
    %v666 = vperm.slane %v658, %v665
    %v667 = vrot.slane %v654, 4
    %v668 = vsel %vm247, %v667, %v648
    %v669 = vrot.slane %v648, 4
    %v670 = vsel %vm247, %v654, %v669
    %v672 = vunpack.c.l.s4 1934713408
    %v673 = vunpack.c.0.s8 %v672
    %v674 = vperm.slane %v668, %v673
    %v676 = vunpack.c.l.s4 1934713408
    %v677 = vunpack.c.0.s8 %v676
    %v678 = vperm.slane %v670, %v677
    %v679 = vrot.slane %v674, 4
    %v680 = vsel %vm247, %v679, %v662
    %v681 = vrot.slane %v662, 4
    %v682 = vsel %vm247, %v674, %v681
    %v683 = vrot.slane %v678, 4
    %v684 = vsel %vm247, %v683, %v666
    %v685 = vrot.slane %v666, 4
    %v686 = vsel %vm247, %v678, %v685
    %691 = vrot.lane.b32.xlu0 %v166, 120
    %v692 = vpop.permute.xlu0 %691
    %693 = vrot.lane.b32.xlu0 %v169, 120
    %v694 = vpop.permute.xlu0 %693
    %695 = vrot.lane.b32.xlu0 %v172, 120
    %v696 = vpop.permute.xlu0 %695
    %697 = vrot.lane.b32.xlu0 %v175, 120
    %v698 = vpop.permute.xlu0 %697
    %703 = vrot.lane.b32.xlu0 %v166, 112
    %v704 = vpop.permute.xlu0 %703
    %705 = vrot.lane.b32.xlu0 %v169, 112
    %v706 = vpop.permute.xlu0 %705
    %707 = vrot.lane.b32.xlu0 %v172, 112
    %v708 = vpop.permute.xlu0 %707
    %709 = vrot.lane.b32.xlu0 %v175, 112
    %v710 = vpop.permute.xlu0 %709
    %715 = vrot.lane.b32.xlu0 %v166, 104
    %v716 = vpop.permute.xlu0 %715
    %717 = vrot.lane.b32.xlu0 %v169, 104
    %v718 = vpop.permute.xlu0 %717
    %719 = vrot.lane.b32.xlu0 %v172, 104
    %v720 = vpop.permute.xlu0 %719
    %721 = vrot.lane.b32.xlu0 %v175, 104
    %v722 = vpop.permute.xlu0 %721
    %v727 = vrot.slane %v704, 4
    %v728 = vsel %vm247, %v727, %v166
    %v729 = vrot.slane %v166, 4
    %v730 = vsel %vm247, %v704, %v729
    %v732 = vunpack.c.l.s4 1983009808
    %v733 = vunpack.c.0.s8 %v732
    %v734 = vperm.slane %v728, %v733
    %v736 = vunpack.c.l.s4 1983009808
    %v737 = vunpack.c.0.s8 %v736
    %v738 = vperm.slane %v730, %v737
    %v739 = vrot.slane %v716, 4
    %v740 = vsel %vm247, %v739, %v692
    %v741 = vrot.slane %v692, 4
    %v742 = vsel %vm247, %v716, %v741
    %v744 = vunpack.c.l.s4 1983009808
    %v745 = vunpack.c.0.s8 %v744
    %v746 = vperm.slane %v740, %v745
    %v748 = vunpack.c.l.s4 1983009808
    %v749 = vunpack.c.0.s8 %v748
    %v750 = vperm.slane %v742, %v749
    %v751 = vrot.slane %v746, 4
    %v752 = vsel %vm247, %v751, %v734
    %v753 = vrot.slane %v734, 4
    %v754 = vsel %vm247, %v746, %v753
    %v756 = vunpack.c.l.s4 1934713408
    %v757 = vunpack.c.0.s8 %v756
    %v758 = vperm.slane %v752, %v757
    %v760 = vunpack.c.l.s4 1934713408
    %v761 = vunpack.c.0.s8 %v760
    %v762 = vperm.slane %v754, %v761
    %v763 = vrot.slane %v750, 4
    %v764 = vsel %vm247, %v763, %v738
    %v765 = vrot.slane %v738, 4
    %v766 = vsel %vm247, %v750, %v765
    %v768 = vunpack.c.l.s4 1934713408
    %v769 = vunpack.c.0.s8 %v768
    %v770 = vperm.slane %v764, %v769
    %v772 = vunpack.c.l.s4 1934713408
    %v773 = vunpack.c.0.s8 %v772
    %v774 = vperm.slane %v766, %v773
    %v775 = vrot.slane %v758, 4
    %v776 = vsel %vm247, 0.0, %v775
    %v777 = vrot.slane %v762, 4
    %v778 = vsel %vm247, 0.0, %v777
    %v779 = vrot.slane %v770, 4
    %v780 = vsel %vm247, 0.0, %v779
    %v781 = vrot.slane %v774, 4
    %v782 = vsel %vm247, 0.0, %v781
    %v783 = vrot.slane %v706, 4
    %v784 = vsel %vm247, %v783, %v169
    %v785 = vrot.slane %v169, 4
    %v786 = vsel %vm247, %v706, %v785
    %v788 = vunpack.c.l.s4 1983009808
    %v789 = vunpack.c.0.s8 %v788
    %v790 = vperm.slane %v784, %v789
    %v792 = vunpack.c.l.s4 1983009808
    %v793 = vunpack.c.0.s8 %v792
    %v794 = vperm.slane %v786, %v793
    %v795 = vrot.slane %v718, 4
    %v796 = vsel %vm247, %v795, %v694
    %v797 = vrot.slane %v694, 4
    %v798 = vsel %vm247, %v718, %v797
    %v800 = vunpack.c.l.s4 1983009808
    %v801 = vunpack.c.0.s8 %v800
    %v802 = vperm.slane %v796, %v801
    %v804 = vunpack.c.l.s4 1983009808
    %v805 = vunpack.c.0.s8 %v804
    %v806 = vperm.slane %v798, %v805
    %v807 = vrot.slane %v802, 4
    %v808 = vsel %vm247, %v807, %v790
    %v809 = vrot.slane %v790, 4
    %v810 = vsel %vm247, %v802, %v809
    %v812 = vunpack.c.l.s4 1934713408
    %v813 = vunpack.c.0.s8 %v812
    %v814 = vperm.slane %v808, %v813
    %v816 = vunpack.c.l.s4 1934713408
    %v817 = vunpack.c.0.s8 %v816
    %v818 = vperm.slane %v810, %v817
    %v819 = vrot.slane %v806, 4
    %v820 = vsel %vm247, %v819, %v794
    %v821 = vrot.slane %v794, 4
    %v822 = vsel %vm247, %v806, %v821
    %v824 = vunpack.c.l.s4 1934713408
    %v825 = vunpack.c.0.s8 %v824
    %v826 = vperm.slane %v820, %v825
    %v828 = vunpack.c.l.s4 1934713408
    %v829 = vunpack.c.0.s8 %v828
    %v830 = vperm.slane %v822, %v829
    %v831 = vrot.slane %v814, 4
    %v832 = vsel %vm247, 0.0, %v831
    %v833 = vrot.slane %v818, 4
    %v834 = vsel %vm247, 0.0, %v833
    %v835 = vrot.slane %v826, 4
    %v836 = vsel %vm247, 0.0, %v835
    %v837 = vrot.slane %v830, 4
    %v838 = vsel %vm247, 0.0, %v837
    %v839 = vrot.slane %v708, 4
    %v840 = vsel %vm247, %v839, %v172
    %v841 = vrot.slane %v172, 4
    %v842 = vsel %vm247, %v708, %v841
    %v844 = vunpack.c.l.s4 1983009808
    %v845 = vunpack.c.0.s8 %v844
    %v846 = vperm.slane %v840, %v845
    %v848 = vunpack.c.l.s4 1983009808
    %v849 = vunpack.c.0.s8 %v848
    %v850 = vperm.slane %v842, %v849
    %v851 = vrot.slane %v720, 4
    %v852 = vsel %vm247, %v851, %v696
    %v853 = vrot.slane %v696, 4
    %v854 = vsel %vm247, %v720, %v853
    %v856 = vunpack.c.l.s4 1983009808
    %v857 = vunpack.c.0.s8 %v856
    %v858 = vperm.slane %v852, %v857
    %v860 = vunpack.c.l.s4 1983009808
    %v861 = vunpack.c.0.s8 %v860
    %v862 = vperm.slane %v854, %v861
    %v863 = vrot.slane %v858, 4
    %v864 = vsel %vm247, %v863, %v846
    %v865 = vrot.slane %v846, 4
    %v866 = vsel %vm247, %v858, %v865
    %v868 = vunpack.c.l.s4 1934713408
    %v869 = vunpack.c.0.s8 %v868
    %v870 = vperm.slane %v864, %v869
    %v872 = vunpack.c.l.s4 1934713408
    %v873 = vunpack.c.0.s8 %v872
    %v874 = vperm.slane %v866, %v873
    %v875 = vrot.slane %v862, 4
    %v876 = vsel %vm247, %v875, %v850
    %v877 = vrot.slane %v850, 4
    %v878 = vsel %vm247, %v862, %v877
    %v880 = vunpack.c.l.s4 1934713408
    %v881 = vunpack.c.0.s8 %v880
    %v882 = vperm.slane %v876, %v881
    %v884 = vunpack.c.l.s4 1934713408
    %v885 = vunpack.c.0.s8 %v884
    %v886 = vperm.slane %v878, %v885
    %v887 = vrot.slane %v870, 4
    %v888 = vsel %vm247, 0.0, %v887
    %v889 = vrot.slane %v874, 4
    %v890 = vsel %vm247, 0.0, %v889
    %v891 = vrot.slane %v882, 4
    %v892 = vsel %vm247, 0.0, %v891
    %v893 = vrot.slane %v886, 4
    %v894 = vsel %vm247, 0.0, %v893
    %v895 = vrot.slane %v710, 4
    %v896 = vsel %vm247, %v895, %v175
    %v897 = vrot.slane %v175, 4
    %v898 = vsel %vm247, %v710, %v897
    %v900 = vunpack.c.l.s4 1983009808
    %v901 = vunpack.c.0.s8 %v900
    %v902 = vperm.slane %v896, %v901
    %v904 = vunpack.c.l.s4 1983009808
    %v905 = vunpack.c.0.s8 %v904
    %v906 = vperm.slane %v898, %v905
    %v907 = vrot.slane %v722, 4
    %v908 = vsel %vm247, %v907, %v698
    %v909 = vrot.slane %v698, 4
    %v910 = vsel %vm247, %v722, %v909
    %v912 = vunpack.c.l.s4 1983009808
    %v913 = vunpack.c.0.s8 %v912
    %v914 = vperm.slane %v908, %v913
    %v916 = vunpack.c.l.s4 1983009808
    %v917 = vunpack.c.0.s8 %v916
    %v918 = vperm.slane %v910, %v917
    %v919 = vrot.slane %v914, 4
    %v920 = vsel %vm247, %v919, %v902
    %v921 = vrot.slane %v902, 4
    %v922 = vsel %vm247, %v914, %v921
    %v924 = vunpack.c.l.s4 1934713408
    %v925 = vunpack.c.0.s8 %v924
    %v926 = vperm.slane %v920, %v925
    %v928 = vunpack.c.l.s4 1934713408
    %v929 = vunpack.c.0.s8 %v928
    %v930 = vperm.slane %v922, %v929
    %v931 = vrot.slane %v918, 4
    %v932 = vsel %vm247, %v931, %v906
    %v933 = vrot.slane %v906, 4
    %v934 = vsel %vm247, %v918, %v933
    %v936 = vunpack.c.l.s4 1934713408
    %v937 = vunpack.c.0.s8 %v936
    %v938 = vperm.slane %v932, %v937
    %v940 = vunpack.c.l.s4 1934713408
    %v941 = vunpack.c.0.s8 %v940
    %v942 = vperm.slane %v934, %v941
    %v943 = vrot.slane %v926, 4
    %v944 = vsel %vm247, 0.0, %v943
    %v945 = vrot.slane %v930, 4
    %v946 = vsel %vm247, 0.0, %v945
    %v947 = vrot.slane %v938, 4
    %v948 = vsel %vm247, 0.0, %v947
    %v949 = vrot.slane %v942, 4
    %v950 = vsel %vm247, 0.0, %v949
    %v951 = vsel %vm247, %v777, %v758
    %v953 = vunpack.c.l.s4 1983009808
    %v954 = vunpack.c.0.s8 %v953
    %v955 = vperm.slane %v951, %v954
    %v956 = vrot.slane %v778, 4
    %v957 = vsel %vm247, %v956, %v776
    %v959 = vunpack.c.l.s4 1983009808
    %v960 = vunpack.c.0.s8 %v959
    %v961 = vperm.slane %v957, %v960
    %v962 = vsel %vm247, %v781, %v770
    %v964 = vunpack.c.l.s4 1983009808
    %v965 = vunpack.c.0.s8 %v964
    %v966 = vperm.slane %v962, %v965
    %v967 = vrot.slane %v782, 4
    %v968 = vsel %vm247, %v967, %v780
    %v970 = vunpack.c.l.s4 1983009808
    %v971 = vunpack.c.0.s8 %v970
    %v972 = vperm.slane %v968, %v971
    %v973 = vrot.slane %v961, 4
    %v974 = vsel %vm247, %v973, %v955
    %v975 = vrot.slane %v955, 4
    %v976 = vsel %vm247, %v961, %v975
    %v978 = vunpack.c.l.s4 1934713408
    %v979 = vunpack.c.0.s8 %v978
    %v980 = vperm.slane %v974, %v979
    %v982 = vunpack.c.l.s4 1934713408
    %v983 = vunpack.c.0.s8 %v982
    %v984 = vperm.slane %v976, %v983
    %v985 = vrot.slane %v972, 4
    %v986 = vsel %vm247, %v985, %v966
    %v987 = vrot.slane %v966, 4
    %v988 = vsel %vm247, %v972, %v987
    %v990 = vunpack.c.l.s4 1934713408
    %v991 = vunpack.c.0.s8 %v990
    %v992 = vperm.slane %v986, %v991
    %v994 = vunpack.c.l.s4 1934713408
    %v995 = vunpack.c.0.s8 %v994
    %v996 = vperm.slane %v988, %v995
    %v997 = vrot.slane %v992, 4
    %v998 = vsel %vm247, %v997, %v980
    %v999 = vrot.slane %v980, 4
    %v1000 = vsel %vm247, %v992, %v999
    %v1001 = vrot.slane %v996, 4
    %v1002 = vsel %vm247, %v1001, %v984
    %v1003 = vrot.slane %v984, 4
    %v1004 = vsel %vm247, %v996, %v1003
    %v1005 = vsel %vm247, %v833, %v814
    %v1007 = vunpack.c.l.s4 1983009808
    %v1008 = vunpack.c.0.s8 %v1007
    %v1009 = vperm.slane %v1005, %v1008
    %v1010 = vrot.slane %v834, 4
    %v1011 = vsel %vm247, %v1010, %v832
    %v1013 = vunpack.c.l.s4 1983009808
    %v1014 = vunpack.c.0.s8 %v1013
    %v1015 = vperm.slane %v1011, %v1014
    %v1016 = vsel %vm247, %v837, %v826
    %v1018 = vunpack.c.l.s4 1983009808
    %v1019 = vunpack.c.0.s8 %v1018
    %v1020 = vperm.slane %v1016, %v1019
    %v1021 = vrot.slane %v838, 4
    %v1022 = vsel %vm247, %v1021, %v836
    %v1024 = vunpack.c.l.s4 1983009808
    %v1025 = vunpack.c.0.s8 %v1024
    %v1026 = vperm.slane %v1022, %v1025
    %v1027 = vrot.slane %v1015, 4
    %v1028 = vsel %vm247, %v1027, %v1009
    %v1029 = vrot.slane %v1009, 4
    %v1030 = vsel %vm247, %v1015, %v1029
    %v1032 = vunpack.c.l.s4 1934713408
    %v1033 = vunpack.c.0.s8 %v1032
    %v1034 = vperm.slane %v1028, %v1033
    %v1036 = vunpack.c.l.s4 1934713408
    %v1037 = vunpack.c.0.s8 %v1036
    %v1038 = vperm.slane %v1030, %v1037
    %v1039 = vrot.slane %v1026, 4
    %v1040 = vsel %vm247, %v1039, %v1020
    %v1041 = vrot.slane %v1020, 4
    %v1042 = vsel %vm247, %v1026, %v1041
    %v1044 = vunpack.c.l.s4 1934713408
    %v1045 = vunpack.c.0.s8 %v1044
    %v1046 = vperm.slane %v1040, %v1045
    %v1048 = vunpack.c.l.s4 1934713408
    %v1049 = vunpack.c.0.s8 %v1048
    %v1050 = vperm.slane %v1042, %v1049
    %v1051 = vrot.slane %v1046, 4
    %v1052 = vsel %vm247, %v1051, %v1034
    %v1053 = vrot.slane %v1034, 4
    %v1054 = vsel %vm247, %v1046, %v1053
    %v1055 = vrot.slane %v1050, 4
    %v1056 = vsel %vm247, %v1055, %v1038
    %v1057 = vrot.slane %v1038, 4
    %v1058 = vsel %vm247, %v1050, %v1057
    %v1059 = vsel %vm247, %v889, %v870
    %v1061 = vunpack.c.l.s4 1983009808
    %v1062 = vunpack.c.0.s8 %v1061
    %v1063 = vperm.slane %v1059, %v1062
    %v1064 = vrot.slane %v890, 4
    %v1065 = vsel %vm247, %v1064, %v888
    %v1067 = vunpack.c.l.s4 1983009808
    %v1068 = vunpack.c.0.s8 %v1067
    %v1069 = vperm.slane %v1065, %v1068
    %v1070 = vsel %vm247, %v893, %v882
    %v1072 = vunpack.c.l.s4 1983009808
    %v1073 = vunpack.c.0.s8 %v1072
    %v1074 = vperm.slane %v1070, %v1073
    %v1075 = vrot.slane %v894, 4
    %v1076 = vsel %vm247, %v1075, %v892
    %v1078 = vunpack.c.l.s4 1983009808
    %v1079 = vunpack.c.0.s8 %v1078
    %v1080 = vperm.slane %v1076, %v1079
    %v1081 = vrot.slane %v1069, 4
    %v1082 = vsel %vm247, %v1081, %v1063
    %v1083 = vrot.slane %v1063, 4
    %v1084 = vsel %vm247, %v1069, %v1083
    %v1086 = vunpack.c.l.s4 1934713408
    %v1087 = vunpack.c.0.s8 %v1086
    %v1088 = vperm.slane %v1082, %v1087
    %v1090 = vunpack.c.l.s4 1934713408
    %v1091 = vunpack.c.0.s8 %v1090
    %v1092 = vperm.slane %v1084, %v1091
    %v1093 = vrot.slane %v1080, 4
    %v1094 = vsel %vm247, %v1093, %v1074
    %v1095 = vrot.slane %v1074, 4
    %v1096 = vsel %vm247, %v1080, %v1095
    %v1098 = vunpack.c.l.s4 1934713408
    %v1099 = vunpack.c.0.s8 %v1098
    %v1100 = vperm.slane %v1094, %v1099
    %v1102 = vunpack.c.l.s4 1934713408
    %v1103 = vunpack.c.0.s8 %v1102
    %v1104 = vperm.slane %v1096, %v1103
    %v1105 = vrot.slane %v1100, 4
    %v1106 = vsel %vm247, %v1105, %v1088
    %v1107 = vrot.slane %v1088, 4
    %v1108 = vsel %vm247, %v1100, %v1107
    %v1109 = vrot.slane %v1104, 4
    %v1110 = vsel %vm247, %v1109, %v1092
    %v1111 = vrot.slane %v1092, 4
    %v1112 = vsel %vm247, %v1104, %v1111
    %v1113 = vsel %vm247, %v945, %v926
    %v1115 = vunpack.c.l.s4 1983009808
    %v1116 = vunpack.c.0.s8 %v1115
    %v1117 = vperm.slane %v1113, %v1116
    %v1118 = vrot.slane %v946, 4
    %v1119 = vsel %vm247, %v1118, %v944
    %v1121 = vunpack.c.l.s4 1983009808
    %v1122 = vunpack.c.0.s8 %v1121
    %v1123 = vperm.slane %v1119, %v1122
    %v1124 = vsel %vm247, %v949, %v938
    %v1126 = vunpack.c.l.s4 1983009808
    %v1127 = vunpack.c.0.s8 %v1126
    %v1128 = vperm.slane %v1124, %v1127
    %v1129 = vrot.slane %v950, 4
    %v1130 = vsel %vm247, %v1129, %v948
    %v1132 = vunpack.c.l.s4 1983009808
    %v1133 = vunpack.c.0.s8 %v1132
    %v1134 = vperm.slane %v1130, %v1133
    %v1135 = vrot.slane %v1123, 4
    %v1136 = vsel %vm247, %v1135, %v1117
    %v1137 = vrot.slane %v1117, 4
    %v1138 = vsel %vm247, %v1123, %v1137
    %v1140 = vunpack.c.l.s4 1934713408
    %v1141 = vunpack.c.0.s8 %v1140
    %v1142 = vperm.slane %v1136, %v1141
    %v1144 = vunpack.c.l.s4 1934713408
    %v1145 = vunpack.c.0.s8 %v1144
    %v1146 = vperm.slane %v1138, %v1145
    %v1147 = vrot.slane %v1134, 4
    %v1148 = vsel %vm247, %v1147, %v1128
    %v1149 = vrot.slane %v1128, 4
    %v1150 = vsel %vm247, %v1134, %v1149
    %v1152 = vunpack.c.l.s4 1934713408
    %v1153 = vunpack.c.0.s8 %v1152
    %v1154 = vperm.slane %v1148, %v1153
    %v1156 = vunpack.c.l.s4 1934713408
    %v1157 = vunpack.c.0.s8 %v1156
    %v1158 = vperm.slane %v1150, %v1157
    %v1159 = vrot.slane %v1154, 4
    %v1160 = vsel %vm247, %v1159, %v1142
    %v1161 = vrot.slane %v1142, 4
    %v1162 = vsel %vm247, %v1154, %v1161
    %v1163 = vrot.slane %v1158, 4
    %v1164 = vsel %vm247, %v1163, %v1146
    %v1165 = vrot.slane %v1146, 4
    %v1166 = vsel %vm247, %v1158, %v1165
    %1171 = vrot.lane.b32.xlu0 %v195, 120
    %v1172 = vpop.permute.xlu0 %1171
    %1173 = vrot.lane.b32.xlu0 %v198, 120
    %v1174 = vpop.permute.xlu0 %1173
    %1175 = vrot.lane.b32.xlu0 %v201, 120
    %v1176 = vpop.permute.xlu0 %1175
    %1177 = vrot.lane.b32.xlu0 %v204, 120
    %v1178 = vpop.permute.xlu0 %1177
    %1183 = vrot.lane.b32.xlu0 %v195, 112
    %v1184 = vpop.permute.xlu0 %1183
    %1185 = vrot.lane.b32.xlu0 %v198, 112
    %v1186 = vpop.permute.xlu0 %1185
    %1187 = vrot.lane.b32.xlu0 %v201, 112
    %v1188 = vpop.permute.xlu0 %1187
    %1189 = vrot.lane.b32.xlu0 %v204, 112
    %v1190 = vpop.permute.xlu0 %1189
    %1195 = vrot.lane.b32.xlu0 %v195, 104
    %v1196 = vpop.permute.xlu0 %1195
    %1197 = vrot.lane.b32.xlu0 %v198, 104
    %v1198 = vpop.permute.xlu0 %1197
    %1199 = vrot.lane.b32.xlu0 %v201, 104
    %v1200 = vpop.permute.xlu0 %1199
    %1201 = vrot.lane.b32.xlu0 %v204, 104
    %v1202 = vpop.permute.xlu0 %1201
    %v1207 = vrot.slane %v1184, 4
    %v1208 = vsel %vm247, %v1207, %v195
    %v1209 = vrot.slane %v195, 4
    %v1210 = vsel %vm247, %v1184, %v1209
    %v1212 = vunpack.c.l.s4 1983009808
    %v1213 = vunpack.c.0.s8 %v1212
    %v1214 = vperm.slane %v1208, %v1213
    %v1216 = vunpack.c.l.s4 1983009808
    %v1217 = vunpack.c.0.s8 %v1216
    %v1218 = vperm.slane %v1210, %v1217
    %v1219 = vrot.slane %v1196, 4
    %v1220 = vsel %vm247, %v1219, %v1172
    %v1221 = vrot.slane %v1172, 4
    %v1222 = vsel %vm247, %v1196, %v1221
    %v1224 = vunpack.c.l.s4 1983009808
    %v1225 = vunpack.c.0.s8 %v1224
    %v1226 = vperm.slane %v1220, %v1225
    %v1228 = vunpack.c.l.s4 1983009808
    %v1229 = vunpack.c.0.s8 %v1228
    %v1230 = vperm.slane %v1222, %v1229
    %v1231 = vrot.slane %v1226, 4
    %v1232 = vsel %vm247, %v1231, %v1214
    %v1233 = vrot.slane %v1214, 4
    %v1234 = vsel %vm247, %v1226, %v1233
    %v1236 = vunpack.c.l.s4 1934713408
    %v1237 = vunpack.c.0.s8 %v1236
    %v1238 = vperm.slane %v1232, %v1237
    %v1240 = vunpack.c.l.s4 1934713408
    %v1241 = vunpack.c.0.s8 %v1240
    %v1242 = vperm.slane %v1234, %v1241
    %v1243 = vrot.slane %v1230, 4
    %v1244 = vsel %vm247, %v1243, %v1218
    %v1245 = vrot.slane %v1218, 4
    %v1246 = vsel %vm247, %v1230, %v1245
    %v1248 = vunpack.c.l.s4 1934713408
    %v1249 = vunpack.c.0.s8 %v1248
    %v1250 = vperm.slane %v1244, %v1249
    %v1252 = vunpack.c.l.s4 1934713408
    %v1253 = vunpack.c.0.s8 %v1252
    %v1254 = vperm.slane %v1246, %v1253
    %v1255 = vrot.slane %v1238, 4
    %v1256 = vsel %vm247, 0.0, %v1255
    %v1257 = vrot.slane %v1242, 4
    %v1258 = vsel %vm247, 0.0, %v1257
    %v1259 = vrot.slane %v1250, 4
    %v1260 = vsel %vm247, 0.0, %v1259
    %v1261 = vrot.slane %v1254, 4
    %v1262 = vsel %vm247, 0.0, %v1261
    %v1263 = vrot.slane %v1186, 4
    %v1264 = vsel %vm247, %v1263, %v198
    %v1265 = vrot.slane %v198, 4
    %v1266 = vsel %vm247, %v1186, %v1265
    %v1268 = vunpack.c.l.s4 1983009808
    %v1269 = vunpack.c.0.s8 %v1268
    %v1270 = vperm.slane %v1264, %v1269
    %v1272 = vunpack.c.l.s4 1983009808
    %v1273 = vunpack.c.0.s8 %v1272
    %v1274 = vperm.slane %v1266, %v1273
    %v1275 = vrot.slane %v1198, 4
    %v1276 = vsel %vm247, %v1275, %v1174
    %v1277 = vrot.slane %v1174, 4
    %v1278 = vsel %vm247, %v1198, %v1277
    %v1280 = vunpack.c.l.s4 1983009808
    %v1281 = vunpack.c.0.s8 %v1280
    %v1282 = vperm.slane %v1276, %v1281
    %v1284 = vunpack.c.l.s4 1983009808
    %v1285 = vunpack.c.0.s8 %v1284
    %v1286 = vperm.slane %v1278, %v1285
    %v1287 = vrot.slane %v1282, 4
    %v1288 = vsel %vm247, %v1287, %v1270
    %v1289 = vrot.slane %v1270, 4
    %v1290 = vsel %vm247, %v1282, %v1289
    %v1292 = vunpack.c.l.s4 1934713408
    %v1293 = vunpack.c.0.s8 %v1292
    %v1294 = vperm.slane %v1288, %v1293
    %v1296 = vunpack.c.l.s4 1934713408
    %v1297 = vunpack.c.0.s8 %v1296
    %v1298 = vperm.slane %v1290, %v1297
    %v1299 = vrot.slane %v1286, 4
    %v1300 = vsel %vm247, %v1299, %v1274
    %v1301 = vrot.slane %v1274, 4
    %v1302 = vsel %vm247, %v1286, %v1301
    %v1304 = vunpack.c.l.s4 1934713408
    %v1305 = vunpack.c.0.s8 %v1304
    %v1306 = vperm.slane %v1300, %v1305
    %v1308 = vunpack.c.l.s4 1934713408
    %v1309 = vunpack.c.0.s8 %v1308
    %v1310 = vperm.slane %v1302, %v1309
    %v1311 = vrot.slane %v1294, 4
    %v1312 = vsel %vm247, 0.0, %v1311
    %v1313 = vrot.slane %v1298, 4
    %v1314 = vsel %vm247, 0.0, %v1313
    %v1315 = vrot.slane %v1306, 4
    %v1316 = vsel %vm247, 0.0, %v1315
    %v1317 = vrot.slane %v1310, 4
    %v1318 = vsel %vm247, 0.0, %v1317
    %v1319 = vrot.slane %v1188, 4
    %v1320 = vsel %vm247, %v1319, %v201
    %v1321 = vrot.slane %v201, 4
    %v1322 = vsel %vm247, %v1188, %v1321
    %v1324 = vunpack.c.l.s4 1983009808
    %v1325 = vunpack.c.0.s8 %v1324
    %v1326 = vperm.slane %v1320, %v1325
    %v1328 = vunpack.c.l.s4 1983009808
    %v1329 = vunpack.c.0.s8 %v1328
    %v1330 = vperm.slane %v1322, %v1329
    %v1331 = vrot.slane %v1200, 4
    %v1332 = vsel %vm247, %v1331, %v1176
    %v1333 = vrot.slane %v1176, 4
    %v1334 = vsel %vm247, %v1200, %v1333
    %v1336 = vunpack.c.l.s4 1983009808
    %v1337 = vunpack.c.0.s8 %v1336
    %v1338 = vperm.slane %v1332, %v1337
    %v1340 = vunpack.c.l.s4 1983009808
    %v1341 = vunpack.c.0.s8 %v1340
    %v1342 = vperm.slane %v1334, %v1341
    %v1343 = vrot.slane %v1338, 4
    %v1344 = vsel %vm247, %v1343, %v1326
    %v1345 = vrot.slane %v1326, 4
    %v1346 = vsel %vm247, %v1338, %v1345
    %v1348 = vunpack.c.l.s4 1934713408
    %v1349 = vunpack.c.0.s8 %v1348
    %v1350 = vperm.slane %v1344, %v1349
    %v1352 = vunpack.c.l.s4 1934713408
    %v1353 = vunpack.c.0.s8 %v1352
    %v1354 = vperm.slane %v1346, %v1353
    %v1355 = vrot.slane %v1342, 4
    %v1356 = vsel %vm247, %v1355, %v1330
    %v1357 = vrot.slane %v1330, 4
    %v1358 = vsel %vm247, %v1342, %v1357
    %v1360 = vunpack.c.l.s4 1934713408
    %v1361 = vunpack.c.0.s8 %v1360
    %v1362 = vperm.slane %v1356, %v1361
    %v1364 = vunpack.c.l.s4 1934713408
    %v1365 = vunpack.c.0.s8 %v1364
    %v1366 = vperm.slane %v1358, %v1365
    %v1367 = vrot.slane %v1350, 4
    %v1368 = vsel %vm247, 0.0, %v1367
    %v1369 = vrot.slane %v1354, 4
    %v1370 = vsel %vm247, 0.0, %v1369
    %v1371 = vrot.slane %v1362, 4
    %v1372 = vsel %vm247, 0.0, %v1371
    %v1373 = vrot.slane %v1366, 4
    %v1374 = vsel %vm247, 0.0, %v1373
    %v1375 = vrot.slane %v1190, 4
    %v1376 = vsel %vm247, %v1375, %v204
    %v1377 = vrot.slane %v204, 4
    %v1378 = vsel %vm247, %v1190, %v1377
    %v1380 = vunpack.c.l.s4 1983009808
    %v1381 = vunpack.c.0.s8 %v1380
    %v1382 = vperm.slane %v1376, %v1381
    %v1384 = vunpack.c.l.s4 1983009808
    %v1385 = vunpack.c.0.s8 %v1384
    %v1386 = vperm.slane %v1378, %v1385
    %v1387 = vrot.slane %v1202, 4
    %v1388 = vsel %vm247, %v1387, %v1178
    %v1389 = vrot.slane %v1178, 4
    %v1390 = vsel %vm247, %v1202, %v1389
    %v1392 = vunpack.c.l.s4 1983009808
    %v1393 = vunpack.c.0.s8 %v1392
    %v1394 = vperm.slane %v1388, %v1393
    %v1396 = vunpack.c.l.s4 1983009808
    %v1397 = vunpack.c.0.s8 %v1396
    %v1398 = vperm.slane %v1390, %v1397
    %v1399 = vrot.slane %v1394, 4
    %v1400 = vsel %vm247, %v1399, %v1382
    %v1401 = vrot.slane %v1382, 4
    %v1402 = vsel %vm247, %v1394, %v1401
    %v1404 = vunpack.c.l.s4 1934713408
    %v1405 = vunpack.c.0.s8 %v1404
    %v1406 = vperm.slane %v1400, %v1405
    %v1408 = vunpack.c.l.s4 1934713408
    %v1409 = vunpack.c.0.s8 %v1408
    %v1410 = vperm.slane %v1402, %v1409
    %v1411 = vrot.slane %v1398, 4
    %v1412 = vsel %vm247, %v1411, %v1386
    %v1413 = vrot.slane %v1386, 4
    %v1414 = vsel %vm247, %v1398, %v1413
    %v1416 = vunpack.c.l.s4 1934713408
    %v1417 = vunpack.c.0.s8 %v1416
    %v1418 = vperm.slane %v1412, %v1417
    %v1420 = vunpack.c.l.s4 1934713408
    %v1421 = vunpack.c.0.s8 %v1420
    %v1422 = vperm.slane %v1414, %v1421
    %v1423 = vrot.slane %v1406, 4
    %v1424 = vsel %vm247, 0.0, %v1423
    %v1425 = vrot.slane %v1410, 4
    %v1426 = vsel %vm247, 0.0, %v1425
    %v1427 = vrot.slane %v1418, 4
    %v1428 = vsel %vm247, 0.0, %v1427
    %v1429 = vrot.slane %v1422, 4
    %v1430 = vsel %vm247, 0.0, %v1429
    %v1431 = vsel %vm247, %v1257, %v1238
    %v1433 = vunpack.c.l.s4 1983009808
    %v1434 = vunpack.c.0.s8 %v1433
    %v1435 = vperm.slane %v1431, %v1434
    %v1436 = vrot.slane %v1258, 4
    %v1437 = vsel %vm247, %v1436, %v1256
    %v1439 = vunpack.c.l.s4 1983009808
    %v1440 = vunpack.c.0.s8 %v1439
    %v1441 = vperm.slane %v1437, %v1440
    %v1442 = vsel %vm247, %v1261, %v1250
    %v1444 = vunpack.c.l.s4 1983009808
    %v1445 = vunpack.c.0.s8 %v1444
    %v1446 = vperm.slane %v1442, %v1445
    %v1447 = vrot.slane %v1262, 4
    %v1448 = vsel %vm247, %v1447, %v1260
    %v1450 = vunpack.c.l.s4 1983009808
    %v1451 = vunpack.c.0.s8 %v1450
    %v1452 = vperm.slane %v1448, %v1451
    %v1453 = vrot.slane %v1441, 4
    %v1454 = vsel %vm247, %v1453, %v1435
    %v1455 = vrot.slane %v1435, 4
    %v1456 = vsel %vm247, %v1441, %v1455
    %v1458 = vunpack.c.l.s4 1934713408
    %v1459 = vunpack.c.0.s8 %v1458
    %v1460 = vperm.slane %v1454, %v1459
    %v1462 = vunpack.c.l.s4 1934713408
    %v1463 = vunpack.c.0.s8 %v1462
    %v1464 = vperm.slane %v1456, %v1463
    %v1465 = vrot.slane %v1452, 4
    %v1466 = vsel %vm247, %v1465, %v1446
    %v1467 = vrot.slane %v1446, 4
    %v1468 = vsel %vm247, %v1452, %v1467
    %v1470 = vunpack.c.l.s4 1934713408
    %v1471 = vunpack.c.0.s8 %v1470
    %v1472 = vperm.slane %v1466, %v1471
    %v1474 = vunpack.c.l.s4 1934713408
    %v1475 = vunpack.c.0.s8 %v1474
    %v1476 = vperm.slane %v1468, %v1475
    %v1477 = vrot.slane %v1472, 4
    %v1478 = vsel %vm247, %v1477, %v1460
    %v1479 = vrot.slane %v1460, 4
    %v1480 = vsel %vm247, %v1472, %v1479
    %v1481 = vrot.slane %v1476, 4
    %v1482 = vsel %vm247, %v1481, %v1464
    %v1483 = vrot.slane %v1464, 4
    %v1484 = vsel %vm247, %v1476, %v1483
    %v1485 = vsel %vm247, %v1313, %v1294
    %v1487 = vunpack.c.l.s4 1983009808
    %v1488 = vunpack.c.0.s8 %v1487
    %v1489 = vperm.slane %v1485, %v1488
    %v1490 = vrot.slane %v1314, 4
    %v1491 = vsel %vm247, %v1490, %v1312
    %v1493 = vunpack.c.l.s4 1983009808
    %v1494 = vunpack.c.0.s8 %v1493
    %v1495 = vperm.slane %v1491, %v1494
    %v1496 = vsel %vm247, %v1317, %v1306
    %v1498 = vunpack.c.l.s4 1983009808
    %v1499 = vunpack.c.0.s8 %v1498
    %v1500 = vperm.slane %v1496, %v1499
    %v1501 = vrot.slane %v1318, 4
    %v1502 = vsel %vm247, %v1501, %v1316
    %v1504 = vunpack.c.l.s4 1983009808
    %v1505 = vunpack.c.0.s8 %v1504
    %v1506 = vperm.slane %v1502, %v1505
    %v1507 = vrot.slane %v1495, 4
    %v1508 = vsel %vm247, %v1507, %v1489
    %v1509 = vrot.slane %v1489, 4
    %v1510 = vsel %vm247, %v1495, %v1509
    %v1512 = vunpack.c.l.s4 1934713408
    %v1513 = vunpack.c.0.s8 %v1512
    %v1514 = vperm.slane %v1508, %v1513
    %v1516 = vunpack.c.l.s4 1934713408
    %v1517 = vunpack.c.0.s8 %v1516
    %v1518 = vperm.slane %v1510, %v1517
    %v1519 = vrot.slane %v1506, 4
    %v1520 = vsel %vm247, %v1519, %v1500
    %v1521 = vrot.slane %v1500, 4
    %v1522 = vsel %vm247, %v1506, %v1521
    %v1524 = vunpack.c.l.s4 1934713408
    %v1525 = vunpack.c.0.s8 %v1524
    %v1526 = vperm.slane %v1520, %v1525
    %v1528 = vunpack.c.l.s4 1934713408
    %v1529 = vunpack.c.0.s8 %v1528
    %v1530 = vperm.slane %v1522, %v1529
    %v1531 = vrot.slane %v1526, 4
    %v1532 = vsel %vm247, %v1531, %v1514
    %v1533 = vrot.slane %v1514, 4
    %v1534 = vsel %vm247, %v1526, %v1533
    %v1535 = vrot.slane %v1530, 4
    %v1536 = vsel %vm247, %v1535, %v1518
    %v1537 = vrot.slane %v1518, 4
    %v1538 = vsel %vm247, %v1530, %v1537
    %v1539 = vsel %vm247, %v1369, %v1350
    %v1541 = vunpack.c.l.s4 1983009808
    %v1542 = vunpack.c.0.s8 %v1541
    %v1543 = vperm.slane %v1539, %v1542
    %v1544 = vrot.slane %v1370, 4
    %v1545 = vsel %vm247, %v1544, %v1368
    %v1547 = vunpack.c.l.s4 1983009808
    %v1548 = vunpack.c.0.s8 %v1547
    %v1549 = vperm.slane %v1545, %v1548
    %v1550 = vsel %vm247, %v1373, %v1362
    %v1552 = vunpack.c.l.s4 1983009808
    %v1553 = vunpack.c.0.s8 %v1552
    %v1554 = vperm.slane %v1550, %v1553
    %v1555 = vrot.slane %v1374, 4
    %v1556 = vsel %vm247, %v1555, %v1372
    %v1558 = vunpack.c.l.s4 1983009808
    %v1559 = vunpack.c.0.s8 %v1558
    %v1560 = vperm.slane %v1556, %v1559
    %v1561 = vrot.slane %v1549, 4
    %v1562 = vsel %vm247, %v1561, %v1543
    %v1563 = vrot.slane %v1543, 4
    %v1564 = vsel %vm247, %v1549, %v1563
    %v1566 = vunpack.c.l.s4 1934713408
    %v1567 = vunpack.c.0.s8 %v1566
    %v1568 = vperm.slane %v1562, %v1567
    %v1570 = vunpack.c.l.s4 1934713408
    %v1571 = vunpack.c.0.s8 %v1570
    %v1572 = vperm.slane %v1564, %v1571
    %v1573 = vrot.slane %v1560, 4
    %v1574 = vsel %vm247, %v1573, %v1554
    %v1575 = vrot.slane %v1554, 4
    %v1576 = vsel %vm247, %v1560, %v1575
    %v1578 = vunpack.c.l.s4 1934713408
    %v1579 = vunpack.c.0.s8 %v1578
    %v1580 = vperm.slane %v1574, %v1579
    %v1582 = vunpack.c.l.s4 1934713408
    %v1583 = vunpack.c.0.s8 %v1582
    %v1584 = vperm.slane %v1576, %v1583
    %v1585 = vrot.slane %v1580, 4
    %v1586 = vsel %vm247, %v1585, %v1568
    %v1587 = vrot.slane %v1568, 4
    %v1588 = vsel %vm247, %v1580, %v1587
    %v1589 = vrot.slane %v1584, 4
    %v1590 = vsel %vm247, %v1589, %v1572
    %v1591 = vrot.slane %v1572, 4
    %v1592 = vsel %vm247, %v1584, %v1591
    %v1593 = vsel %vm247, %v1425, %v1406
    %v1595 = vunpack.c.l.s4 1983009808
    %v1596 = vunpack.c.0.s8 %v1595
    %v1597 = vperm.slane %v1593, %v1596
    %v1598 = vrot.slane %v1426, 4
    %v1599 = vsel %vm247, %v1598, %v1424
    %v1601 = vunpack.c.l.s4 1983009808
    %v1602 = vunpack.c.0.s8 %v1601
    %v1603 = vperm.slane %v1599, %v1602
    %v1604 = vsel %vm247, %v1429, %v1418
    %v1606 = vunpack.c.l.s4 1983009808
    %v1607 = vunpack.c.0.s8 %v1606
    %v1608 = vperm.slane %v1604, %v1607
    %v1609 = vrot.slane %v1430, 4
    %v1610 = vsel %vm247, %v1609, %v1428
    %v1612 = vunpack.c.l.s4 1983009808
    %v1613 = vunpack.c.0.s8 %v1612
    %v1614 = vperm.slane %v1610, %v1613
    %v1615 = vrot.slane %v1603, 4
    %v1616 = vsel %vm247, %v1615, %v1597
    %v1617 = vrot.slane %v1597, 4
    %v1618 = vsel %vm247, %v1603, %v1617
    %v1620 = vunpack.c.l.s4 1934713408
    %v1621 = vunpack.c.0.s8 %v1620
    %v1622 = vperm.slane %v1616, %v1621
    %v1624 = vunpack.c.l.s4 1934713408
    %v1625 = vunpack.c.0.s8 %v1624
    %v1626 = vperm.slane %v1618, %v1625
    %v1627 = vrot.slane %v1614, 4
    %v1628 = vsel %vm247, %v1627, %v1608
    %v1629 = vrot.slane %v1608, 4
    %v1630 = vsel %vm247, %v1614, %v1629
    %v1632 = vunpack.c.l.s4 1934713408
    %v1633 = vunpack.c.0.s8 %v1632
    %v1634 = vperm.slane %v1628, %v1633
    %v1636 = vunpack.c.l.s4 1934713408
    %v1637 = vunpack.c.0.s8 %v1636
    %v1638 = vperm.slane %v1630, %v1637
    %v1639 = vrot.slane %v1634, 4
    %v1640 = vsel %vm247, %v1639, %v1622
    %v1641 = vrot.slane %v1622, 4
    %v1642 = vsel %vm247, %v1634, %v1641
    %v1643 = vrot.slane %v1638, 4
    %v1644 = vsel %vm247, %v1643, %v1626
    %v1645 = vrot.slane %v1626, 4
    %v1646 = vsel %vm247, %v1638, %v1645
    %vm1647 = vcmask 64512
    %v1649 = vsel %vm1647, %v518, 0
    %v1652 = vsel %vm1647, %v572, 0
    %v1655 = vsel %vm1647, %v998, 0
    %v1658 = vsel %vm1647, %v1052, 0
    %1660 = vmatpush.xpose.msra.mxu0 0.0
    %1661 = vmatpush.xpose.msra.mxu0 0.0
    %1662 = vmatpush.xpose.msra.mxu0 0.0
    %1663 = vmatpush.xpose.msra.mxu0 0.0
    %1664 = vmatpush.xpose.msra.mxu0 0.0
    %1665 = vmatpush.xpose.msra.mxu0 0.0
    %1666 = vmatpush.xpose.msra.mxu0 0.0
    %1667 = vmatpush.xpose.msra.mxu0 0.0
    %1668 = vmatpush.xpose.msra.mxu0 0.0
    %1669 = vmatpush.xpose.msra.mxu0 0.0
    %1670 = vmatpush.xpose.msra.mxu0 0.0
    %1671 = vmatpush.xpose.msra.mxu0 0.0
    %1672 = vmatpush.xpose.msra.mxu0 0.0
    %1673 = vmatpush.xpose.msra.mxu0 0.0
    %1674 = vmatpush.xpose.msra.mxu0 %v1658
    %1675 = vmatpush.xpose.msra.mxu0 %v1655
    %1676 = vmatmul.f32.gmra.mxu0 %v1649
    %v1677 = vpop.f32.mrf.mxu0
    %v1678 = vadd.f32 0.0, %v1677
    %1679 = vmatmul.f32.gmra.mxu0 %v1652
    %v1680 = vpop.f32.mrf.mxu0
    %v1681 = vadd.f32 0.0, %v1680
    %1682 = vdwg.mxu0
    %v1684 = vsel %vm1647, %v626, 0
    %v1687 = vsel %vm1647, %v680, 0
    %v1690 = vsel %vm1647, %v1106, 0
    %v1693 = vsel %vm1647, %v1160, 0
    %1695 = vmatpush.xpose.msra.mxu0 0.0
    %1696 = vmatpush.xpose.msra.mxu0 0.0
    %1697 = vmatpush.xpose.msra.mxu0 0.0
    %1698 = vmatpush.xpose.msra.mxu0 0.0
    %1699 = vmatpush.xpose.msra.mxu0 0.0
    %1700 = vmatpush.xpose.msra.mxu0 0.0
    %1701 = vmatpush.xpose.msra.mxu0 0.0
    %1702 = vmatpush.xpose.msra.mxu0 0.0
    %1703 = vmatpush.xpose.msra.mxu0 0.0
    %1704 = vmatpush.xpose.msra.mxu0 0.0
    %1705 = vmatpush.xpose.msra.mxu0 0.0
    %1706 = vmatpush.xpose.msra.mxu0 0.0
    %1707 = vmatpush.xpose.msra.mxu0 0.0
    %1708 = vmatpush.xpose.msra.mxu0 0.0
    %1709 = vmatpush.xpose.msra.mxu0 %v1693
    %1710 = vmatpush.xpose.msra.mxu0 %v1690
    %1711 = vmatmul.f32.gmra.mxu0 %v1684
    %v1712 = vpop.f32.mrf.mxu0
    %v1713 = vadd.f32 0.0, %v1712
    %1714 = vmatmul.f32.gmra.mxu0 %v1687
    %v1715 = vpop.f32.mrf.mxu0
    %v1716 = vadd.f32 0.0, %v1715
    %1717 = vdwg.mxu0
    %v1719 = vsel %vm1647, %v520, 0
    %v1722 = vsel %vm1647, %v574, 0
    %v1725 = vsel %vm1647, %v1000, 0
    %v1728 = vsel %vm1647, %v1054, 0
    %1730 = vmatpush.xpose.msra.mxu0 0.0
    %1731 = vmatpush.xpose.msra.mxu0 0.0
    %1732 = vmatpush.xpose.msra.mxu0 0.0
    %1733 = vmatpush.xpose.msra.mxu0 0.0
    %1734 = vmatpush.xpose.msra.mxu0 0.0
    %1735 = vmatpush.xpose.msra.mxu0 0.0
    %1736 = vmatpush.xpose.msra.mxu0 0.0
    %1737 = vmatpush.xpose.msra.mxu0 0.0
    %1738 = vmatpush.xpose.msra.mxu0 0.0
    %1739 = vmatpush.xpose.msra.mxu0 0.0
    %1740 = vmatpush.xpose.msra.mxu0 0.0
    %1741 = vmatpush.xpose.msra.mxu0 0.0
    %1742 = vmatpush.xpose.msra.mxu0 0.0
    %1743 = vmatpush.xpose.msra.mxu0 0.0
    %1744 = vmatpush.xpose.msra.mxu0 %v1728
    %1745 = vmatpush.xpose.msra.mxu0 %v1725
    %1746 = vmatmul.f32.gmra.mxu0 %v1719
    %v1747 = vpop.f32.mrf.mxu0
    %v1748 = vadd.f32 0.0, %v1747
    %1749 = vmatmul.f32.gmra.mxu0 %v1722
    %v1750 = vpop.f32.mrf.mxu0
    %v1751 = vadd.f32 0.0, %v1750
    %1752 = vdwg.mxu0
    %v1754 = vsel %vm1647, %v628, 0
    %v1757 = vsel %vm1647, %v682, 0
    %v1760 = vsel %vm1647, %v1108, 0
    %v1763 = vsel %vm1647, %v1162, 0
    %1765 = vmatpush.xpose.msra.mxu0 0.0
    %1766 = vmatpush.xpose.msra.mxu0 0.0
    %1767 = vmatpush.xpose.msra.mxu0 0.0
    %1768 = vmatpush.xpose.msra.mxu0 0.0
    %1769 = vmatpush.xpose.msra.mxu0 0.0
    %1770 = vmatpush.xpose.msra.mxu0 0.0
    %1771 = vmatpush.xpose.msra.mxu0 0.0
    %1772 = vmatpush.xpose.msra.mxu0 0.0
    %1773 = vmatpush.xpose.msra.mxu0 0.0
    %1774 = vmatpush.xpose.msra.mxu0 0.0
    %1775 = vmatpush.xpose.msra.mxu0 0.0
    %1776 = vmatpush.xpose.msra.mxu0 0.0
    %1777 = vmatpush.xpose.msra.mxu0 0.0
    %1778 = vmatpush.xpose.msra.mxu0 0.0
    %1779 = vmatpush.xpose.msra.mxu0 %v1763
    %1780 = vmatpush.xpose.msra.mxu0 %v1760
    %1781 = vmatmul.f32.gmra.mxu0 %v1754
    %v1782 = vpop.f32.mrf.mxu0
    %v1783 = vadd.f32 0.0, %v1782
    %1784 = vmatmul.f32.gmra.mxu0 %v1757
    %v1785 = vpop.f32.mrf.mxu0
    %v1786 = vadd.f32 0.0, %v1785
    %1787 = vdwg.mxu0
    %v1789 = vsel %vm1647, %v522, 0
    %v1792 = vsel %vm1647, %v576, 0
    %v1795 = vsel %vm1647, %v1002, 0
    %v1798 = vsel %vm1647, %v1056, 0
    %1800 = vmatpush.xpose.msra.mxu0 0.0
    %1801 = vmatpush.xpose.msra.mxu0 0.0
    %1802 = vmatpush.xpose.msra.mxu0 0.0
    %1803 = vmatpush.xpose.msra.mxu0 0.0
    %1804 = vmatpush.xpose.msra.mxu0 0.0
    %1805 = vmatpush.xpose.msra.mxu0 0.0
    %1806 = vmatpush.xpose.msra.mxu0 0.0
    %1807 = vmatpush.xpose.msra.mxu0 0.0
    %1808 = vmatpush.xpose.msra.mxu0 0.0
    %1809 = vmatpush.xpose.msra.mxu0 0.0
    %1810 = vmatpush.xpose.msra.mxu0 0.0
    %1811 = vmatpush.xpose.msra.mxu0 0.0
    %1812 = vmatpush.xpose.msra.mxu0 0.0
    %1813 = vmatpush.xpose.msra.mxu0 0.0
    %1814 = vmatpush.xpose.msra.mxu0 %v1798
    %1815 = vmatpush.xpose.msra.mxu0 %v1795
    %1816 = vmatmul.f32.gmra.mxu0 %v1789
    %v1817 = vpop.f32.mrf.mxu0
    %v1818 = vadd.f32 0.0, %v1817
    %1819 = vmatmul.f32.gmra.mxu0 %v1792
    %v1820 = vpop.f32.mrf.mxu0
    %v1821 = vadd.f32 0.0, %v1820
    %1822 = vdwg.mxu0
    %v1824 = vsel %vm1647, %v630, 0
    %v1827 = vsel %vm1647, %v684, 0
    %v1830 = vsel %vm1647, %v1110, 0
    %v1833 = vsel %vm1647, %v1164, 0
    %1835 = vmatpush.xpose.msra.mxu0 0.0
    %1836 = vmatpush.xpose.msra.mxu0 0.0
    %1837 = vmatpush.xpose.msra.mxu0 0.0
    %1838 = vmatpush.xpose.msra.mxu0 0.0
    %1839 = vmatpush.xpose.msra.mxu0 0.0
    %1840 = vmatpush.xpose.msra.mxu0 0.0
    %1841 = vmatpush.xpose.msra.mxu0 0.0
    %1842 = vmatpush.xpose.msra.mxu0 0.0
    %1843 = vmatpush.xpose.msra.mxu0 0.0
    %1844 = vmatpush.xpose.msra.mxu0 0.0
    %1845 = vmatpush.xpose.msra.mxu0 0.0
    %1846 = vmatpush.xpose.msra.mxu0 0.0
    %1847 = vmatpush.xpose.msra.mxu0 0.0
    %1848 = vmatpush.xpose.msra.mxu0 0.0
    %1849 = vmatpush.xpose.msra.mxu0 %v1833
    %1850 = vmatpush.xpose.msra.mxu0 %v1830
    %1851 = vmatmul.f32.gmra.mxu0 %v1824
    %v1852 = vpop.f32.mrf.mxu0
    %v1853 = vadd.f32 0.0, %v1852
    %1854 = vmatmul.f32.gmra.mxu0 %v1827
    %v1855 = vpop.f32.mrf.mxu0
    %v1856 = vadd.f32 0.0, %v1855
    %1857 = vdwg.mxu0
    %v1859 = vsel %vm1647, %v524, 0
    %v1862 = vsel %vm1647, %v578, 0
    %v1865 = vsel %vm1647, %v1004, 0
    %v1868 = vsel %vm1647, %v1058, 0
    %1870 = vmatpush.xpose.msra.mxu0 0.0
    %1871 = vmatpush.xpose.msra.mxu0 0.0
    %1872 = vmatpush.xpose.msra.mxu0 0.0
    %1873 = vmatpush.xpose.msra.mxu0 0.0
    %1874 = vmatpush.xpose.msra.mxu0 0.0
    %1875 = vmatpush.xpose.msra.mxu0 0.0
    %1876 = vmatpush.xpose.msra.mxu0 0.0
    %1877 = vmatpush.xpose.msra.mxu0 0.0
    %1878 = vmatpush.xpose.msra.mxu0 0.0
    %1879 = vmatpush.xpose.msra.mxu0 0.0
    %1880 = vmatpush.xpose.msra.mxu0 0.0
    %1881 = vmatpush.xpose.msra.mxu0 0.0
    %1882 = vmatpush.xpose.msra.mxu0 0.0
    %1883 = vmatpush.xpose.msra.mxu0 0.0
    %1884 = vmatpush.xpose.msra.mxu0 %v1868
    %1885 = vmatpush.xpose.msra.mxu0 %v1865
    %1886 = vmatmul.f32.gmra.mxu0 %v1859
    %v1887 = vpop.f32.mrf.mxu0
    %v1888 = vadd.f32 0.0, %v1887
    %1889 = vmatmul.f32.gmra.mxu0 %v1862
    %v1890 = vpop.f32.mrf.mxu0
    %v1891 = vadd.f32 0.0, %v1890
    %1892 = vdwg.mxu0
    %v1894 = vsel %vm1647, %v632, 0
    %v1897 = vsel %vm1647, %v686, 0
    %v1900 = vsel %vm1647, %v1112, 0
    %v1903 = vsel %vm1647, %v1166, 0
    %1905 = vmatpush.xpose.msra.mxu0 0.0
    %1906 = vmatpush.xpose.msra.mxu0 0.0
    %1907 = vmatpush.xpose.msra.mxu0 0.0
    %1908 = vmatpush.xpose.msra.mxu0 0.0
    %1909 = vmatpush.xpose.msra.mxu0 0.0
    %1910 = vmatpush.xpose.msra.mxu0 0.0
    %1911 = vmatpush.xpose.msra.mxu0 0.0
    %1912 = vmatpush.xpose.msra.mxu0 0.0
    %1913 = vmatpush.xpose.msra.mxu0 0.0
    %1914 = vmatpush.xpose.msra.mxu0 0.0
    %1915 = vmatpush.xpose.msra.mxu0 0.0
    %1916 = vmatpush.xpose.msra.mxu0 0.0
    %1917 = vmatpush.xpose.msra.mxu0 0.0
    %1918 = vmatpush.xpose.msra.mxu0 0.0
    %1919 = vmatpush.xpose.msra.mxu0 %v1903
    %1920 = vmatpush.xpose.msra.mxu0 %v1900
    %1921 = vmatmul.f32.gmra.mxu0 %v1894
    %v1922 = vpop.f32.mrf.mxu0
    %v1923 = vadd.f32 0.0, %v1922
    %1924 = vmatmul.f32.gmra.mxu0 %v1897
    %v1925 = vpop.f32.mrf.mxu0
    %v1926 = vadd.f32 0.0, %v1925
    %1927 = vdwg.mxu0
    %vm1928 = vcmask 130048
    %v1929 = vsel %vm1928, %v1678, -inf
    %1930 = vmax.xlane.f32.xlu0 %v1929
    %v1931 = vpop.xlane.xlu0 %1930
    %v1932 = vsel %vm1928, %v1681, -inf
    %1933 = vmax.xlane.f32.xlu0 %v1932
    %v1934 = vpop.xlane.xlu0 %1933
    %v1935 = vsel %vm1928, %v1713, -inf
    %1936 = vmax.xlane.f32.xlu0 %v1935
    %v1937 = vpop.xlane.xlu0 %1936
    %v1938 = vsel %vm1928, %v1716, -inf
    %1939 = vmax.xlane.f32.xlu0 %v1938
    %v1940 = vpop.xlane.xlu0 %1939
    %v1941 = vsel %vm1928, %v1748, -inf
    %1942 = vmax.xlane.f32.xlu0 %v1941
    %v1943 = vpop.xlane.xlu0 %1942
    %v1944 = vsel %vm1928, %v1751, -inf
    %1945 = vmax.xlane.f32.xlu0 %v1944
    %v1946 = vpop.xlane.xlu0 %1945
    %v1947 = vsel %vm1928, %v1783, -inf
    %1948 = vmax.xlane.f32.xlu0 %v1947
    %v1949 = vpop.xlane.xlu0 %1948
    %v1950 = vsel %vm1928, %v1786, -inf
    %1951 = vmax.xlane.f32.xlu0 %v1950
    %v1952 = vpop.xlane.xlu0 %1951
    %v1953 = vsel %vm1928, %v1818, -inf
    %1954 = vmax.xlane.f32.xlu0 %v1953
    %v1955 = vpop.xlane.xlu0 %1954
    %v1956 = vsel %vm1928, %v1821, -inf
    %1957 = vmax.xlane.f32.xlu0 %v1956
    %v1958 = vpop.xlane.xlu0 %1957
    %v1959 = vsel %vm1928, %v1853, -inf
    %1960 = vmax.xlane.f32.xlu0 %v1959
    %v1961 = vpop.xlane.xlu0 %1960
    %v1962 = vsel %vm1928, %v1856, -inf
    %1963 = vmax.xlane.f32.xlu0 %v1962
    %v1964 = vpop.xlane.xlu0 %1963
    %v1965 = vsel %vm1928, %v1888, -inf
    %1966 = vmax.xlane.f32.xlu0 %v1965
    %v1967 = vpop.xlane.xlu0 %1966
    %v1968 = vsel %vm1928, %v1891, -inf
    %1969 = vmax.xlane.f32.xlu0 %v1968
    %v1970 = vpop.xlane.xlu0 %1969
    %v1971 = vsel %vm1928, %v1923, -inf
    %1972 = vmax.xlane.f32.xlu0 %v1971
    %v1973 = vpop.xlane.xlu0 %1972
    %v1974 = vsel %vm1928, %v1926, -inf
    %1975 = vmax.xlane.f32.xlu0 %v1974
    %v1976 = vpop.xlane.xlu0 %1975
    %v1977 = vsub.f32 %v1678, %v1931
    %v1978 = vsub.f32 %v1681, %v1934
    %v1979 = vsub.f32 %v1713, %v1937
    %v1980 = vsub.f32 %v1716, %v1940
    %v1981 = vsub.f32 %v1748, %v1943
    %v1982 = vsub.f32 %v1751, %v1946
    %v1983 = vsub.f32 %v1783, %v1949
    %v1984 = vsub.f32 %v1786, %v1952
    %v1985 = vsub.f32 %v1818, %v1955
    %v1986 = vsub.f32 %v1821, %v1958
    %v1987 = vsub.f32 %v1853, %v1961
    %v1988 = vsub.f32 %v1856, %v1964
    %v1989 = vsub.f32 %v1888, %v1967
    %v1990 = vsub.f32 %v1891, %v1970
    %v1991 = vsub.f32 %v1923, %v1973
    %v1992 = vsub.f32 %v1926, %v1976
    %v1993 = vmul.f32 %v1977, 1.442695
    %v1994 = vpow.pop %v1993
    %v1995 = vmul.f32 %v1978, 1.442695
    %v1996 = vpow.pop %v1995
    %v1997 = vmul.f32 %v1979, 1.442695
    %v1998 = vpow.pop %v1997
    %v1999 = vmul.f32 %v1980, 1.442695
    %v2000 = vpow.pop %v1999
    %v2001 = vmul.f32 %v1981, 1.442695
    %v2002 = vpow.pop %v2001
    %v2003 = vmul.f32 %v1982, 1.442695
    %v2004 = vpow.pop %v2003
    %v2005 = vmul.f32 %v1983, 1.442695
    %v2006 = vpow.pop %v2005
    %v2007 = vmul.f32 %v1984, 1.442695
    %v2008 = vpow.pop %v2007
    %v2009 = vmul.f32 %v1985, 1.442695
    %v2010 = vpow.pop %v2009
    %v2011 = vmul.f32 %v1986, 1.442695
    %v2012 = vpow.pop %v2011
    %v2013 = vmul.f32 %v1987, 1.442695
    %v2014 = vpow.pop %v2013
    %v2015 = vmul.f32 %v1988, 1.442695
    %v2016 = vpow.pop %v2015
    %v2017 = vmul.f32 %v1989, 1.442695
    %v2018 = vpow.pop %v2017
    %v2019 = vmul.f32 %v1990, 1.442695
    %v2020 = vpow.pop %v2019
    %v2021 = vmul.f32 %v1991, 1.442695
    %v2022 = vpow.pop %v2021
    %v2023 = vmul.f32 %v1992, 1.442695
    %v2024 = vpow.pop %v2023
    %v2025 = vsel %vm1928, %v1994, 0.0
    %2026 = vadd.xlane.f32.xlu0 %v2025
    %v2027 = vpop.xlane.xlu0 %2026
    %v2028 = vsel %vm1928, %v1996, 0.0
    %2029 = vadd.xlane.f32.xlu0 %v2028
    %v2030 = vpop.xlane.xlu0 %2029
    %v2031 = vsel %vm1928, %v1998, 0.0
    %2032 = vadd.xlane.f32.xlu0 %v2031
    %v2033 = vpop.xlane.xlu0 %2032
    %v2034 = vsel %vm1928, %v2000, 0.0
    %2035 = vadd.xlane.f32.xlu0 %v2034
    %v2036 = vpop.xlane.xlu0 %2035
    %v2037 = vsel %vm1928, %v2002, 0.0
    %2038 = vadd.xlane.f32.xlu0 %v2037
    %v2039 = vpop.xlane.xlu0 %2038
    %v2040 = vsel %vm1928, %v2004, 0.0
    %2041 = vadd.xlane.f32.xlu0 %v2040
    %v2042 = vpop.xlane.xlu0 %2041
    %v2043 = vsel %vm1928, %v2006, 0.0
    %2044 = vadd.xlane.f32.xlu0 %v2043
    %v2045 = vpop.xlane.xlu0 %2044
    %v2046 = vsel %vm1928, %v2008, 0.0
    %2047 = vadd.xlane.f32.xlu0 %v2046
    %v2048 = vpop.xlane.xlu0 %2047
    %v2049 = vsel %vm1928, %v2010, 0.0
    %2050 = vadd.xlane.f32.xlu0 %v2049
    %v2051 = vpop.xlane.xlu0 %2050
    %v2052 = vsel %vm1928, %v2012, 0.0
    %2053 = vadd.xlane.f32.xlu0 %v2052
    %v2054 = vpop.xlane.xlu0 %2053
    %v2055 = vsel %vm1928, %v2014, 0.0
    %2056 = vadd.xlane.f32.xlu0 %v2055
    %v2057 = vpop.xlane.xlu0 %2056
    %v2058 = vsel %vm1928, %v2016, 0.0
    %2059 = vadd.xlane.f32.xlu0 %v2058
    %v2060 = vpop.xlane.xlu0 %2059
    %v2061 = vsel %vm1928, %v2018, 0.0
    %2062 = vadd.xlane.f32.xlu0 %v2061
    %v2063 = vpop.xlane.xlu0 %2062
    %v2064 = vsel %vm1928, %v2020, 0.0
    %2065 = vadd.xlane.f32.xlu0 %v2064
    %v2066 = vpop.xlane.xlu0 %2065
    %v2067 = vsel %vm1928, %v2022, 0.0
    %2068 = vadd.xlane.f32.xlu0 %v2067
    %v2069 = vpop.xlane.xlu0 %2068
    %v2070 = vsel %vm1928, %v2024, 0.0
    %2071 = vadd.xlane.f32.xlu0 %v2070
    %v2072 = vpop.xlane.xlu0 %2071
    %v2073 = vrcp.pop %v2027
    %v2074 = vrcp.pop %v2030
    %v2075 = vrcp.pop %v2033
    %v2076 = vrcp.pop %v2036
    %v2077 = vrcp.pop %v2039
    %v2078 = vrcp.pop %v2042
    %v2079 = vrcp.pop %v2045
    %v2080 = vrcp.pop %v2048
    %v2081 = vrcp.pop %v2051
    %v2082 = vrcp.pop %v2054
    %v2083 = vrcp.pop %v2057
    %v2084 = vrcp.pop %v2060
    %v2085 = vrcp.pop %v2063
    %v2086 = vrcp.pop %v2066
    %v2087 = vrcp.pop %v2069
    %v2088 = vrcp.pop %v2072
    %v2089 = vmul.f32 %v1994, %v2073
    %v2090 = vmul.f32 %v1996, %v2074
    %v2091 = vmul.f32 %v1998, %v2075
    %v2092 = vmul.f32 %v2000, %v2076
    %v2093 = vmul.f32 %v2002, %v2077
    %v2094 = vmul.f32 %v2004, %v2078
    %v2095 = vmul.f32 %v2006, %v2079
    %v2096 = vmul.f32 %v2008, %v2080
    %v2097 = vmul.f32 %v2010, %v2081
    %v2098 = vmul.f32 %v2012, %v2082
    %v2099 = vmul.f32 %v2014, %v2083
    %v2100 = vmul.f32 %v2016, %v2084
    %v2101 = vmul.f32 %v2018, %v2085
    %v2102 = vmul.f32 %v2020, %v2086
    %v2103 = vmul.f32 %v2022, %v2087
    %v2104 = vmul.f32 %v2024, %v2088
    %v2106 = vsel %vm1928, %v2089, 0
    %v2109 = vsel %vm1928, %v2090, 0
    %2111 = vmatpush.msra.mxu0 0.0
    %2112 = vmatpush.msra.mxu0 0.0
    %2113 = vmatpush.msra.mxu0 0.0
    %2114 = vmatpush.msra.mxu0 0.0
    %2115 = vmatpush.msra.mxu0 0.0
    %2116 = vmatpush.msra.mxu0 0.0
    %2117 = vmatpush.msra.mxu0 0.0
    %2118 = vmatpush.msra.mxu0 0.0
    %2119 = vmatpush.msra.mxu0 0.0
    %2120 = vmatpush.msra.mxu0 0.0
    %2121 = vmatpush.msra.mxu0 0.0
    %2122 = vmatpush.msra.mxu0 0.0
    %2123 = vmatpush.msra.mxu0 0.0
    %2124 = vmatpush.msra.mxu0 0.0
    %2125 = vmatpush.msra.mxu0 %v1532
    %2126 = vmatpush.msra.mxu0 %v1478
    %2127 = vmatmul.f32.gmra.mxu0 %v2106
    %v2128 = vpop.f32.mrf.mxu0
    %v2129 = vadd.f32 0.0, %v2128
    %2130 = vmatmul.f32.gmra.mxu0 %v2109
    %v2131 = vpop.f32.mrf.mxu0
    %v2132 = vadd.f32 0.0, %v2131
    %2133 = vdwg.mxu0
    %v2135 = vsel %vm1928, %v2091, 0
    %v2138 = vsel %vm1928, %v2092, 0
    %2140 = vmatpush.msra.mxu0 0.0
    %2141 = vmatpush.msra.mxu0 0.0
    %2142 = vmatpush.msra.mxu0 0.0
    %2143 = vmatpush.msra.mxu0 0.0
    %2144 = vmatpush.msra.mxu0 0.0
    %2145 = vmatpush.msra.mxu0 0.0
    %2146 = vmatpush.msra.mxu0 0.0
    %2147 = vmatpush.msra.mxu0 0.0
    %2148 = vmatpush.msra.mxu0 0.0
    %2149 = vmatpush.msra.mxu0 0.0
    %2150 = vmatpush.msra.mxu0 0.0
    %2151 = vmatpush.msra.mxu0 0.0
    %2152 = vmatpush.msra.mxu0 0.0
    %2153 = vmatpush.msra.mxu0 0.0
    %2154 = vmatpush.msra.mxu0 %v1640
    %2155 = vmatpush.msra.mxu0 %v1586
    %2156 = vmatmul.f32.gmra.mxu0 %v2135
    %v2157 = vpop.f32.mrf.mxu0
    %v2158 = vadd.f32 0.0, %v2157
    %2159 = vmatmul.f32.gmra.mxu0 %v2138
    %v2160 = vpop.f32.mrf.mxu0
    %v2161 = vadd.f32 0.0, %v2160
    %2162 = vdwg.mxu0
    %v2164 = vsel %vm1928, %v2093, 0
    %v2167 = vsel %vm1928, %v2094, 0
    %2169 = vmatpush.msra.mxu0 0.0
    %2170 = vmatpush.msra.mxu0 0.0
    %2171 = vmatpush.msra.mxu0 0.0
    %2172 = vmatpush.msra.mxu0 0.0
    %2173 = vmatpush.msra.mxu0 0.0
    %2174 = vmatpush.msra.mxu0 0.0
    %2175 = vmatpush.msra.mxu0 0.0
    %2176 = vmatpush.msra.mxu0 0.0
    %2177 = vmatpush.msra.mxu0 0.0
    %2178 = vmatpush.msra.mxu0 0.0
    %2179 = vmatpush.msra.mxu0 0.0
    %2180 = vmatpush.msra.mxu0 0.0
    %2181 = vmatpush.msra.mxu0 0.0
    %2182 = vmatpush.msra.mxu0 0.0
    %2183 = vmatpush.msra.mxu0 %v1534
    %2184 = vmatpush.msra.mxu0 %v1480
    %2185 = vmatmul.f32.gmra.mxu0 %v2164
    %v2186 = vpop.f32.mrf.mxu0
    %v2187 = vadd.f32 0.0, %v2186
    %2188 = vmatmul.f32.gmra.mxu0 %v2167
    %v2189 = vpop.f32.mrf.mxu0
    %v2190 = vadd.f32 0.0, %v2189
    %2191 = vdwg.mxu0
    %v2193 = vsel %vm1928, %v2095, 0
    %v2196 = vsel %vm1928, %v2096, 0
    %2198 = vmatpush.msra.mxu0 0.0
    %2199 = vmatpush.msra.mxu0 0.0
    %2200 = vmatpush.msra.mxu0 0.0
    %2201 = vmatpush.msra.mxu0 0.0
    %2202 = vmatpush.msra.mxu0 0.0
    %2203 = vmatpush.msra.mxu0 0.0
    %2204 = vmatpush.msra.mxu0 0.0
    %2205 = vmatpush.msra.mxu0 0.0
    %2206 = vmatpush.msra.mxu0 0.0
    %2207 = vmatpush.msra.mxu0 0.0
    %2208 = vmatpush.msra.mxu0 0.0
    %2209 = vmatpush.msra.mxu0 0.0
    %2210 = vmatpush.msra.mxu0 0.0
    %2211 = vmatpush.msra.mxu0 0.0
    %2212 = vmatpush.msra.mxu0 %v1642
    %2213 = vmatpush.msra.mxu0 %v1588
    %2214 = vmatmul.f32.gmra.mxu0 %v2193
    %v2215 = vpop.f32.mrf.mxu0
    %v2216 = vadd.f32 0.0, %v2215
    %2217 = vmatmul.f32.gmra.mxu0 %v2196
    %v2218 = vpop.f32.mrf.mxu0
    %v2219 = vadd.f32 0.0, %v2218
    %2220 = vdwg.mxu0
    %v2222 = vsel %vm1928, %v2097, 0
    %v2225 = vsel %vm1928, %v2098, 0
    %2227 = vmatpush.msra.mxu0 0.0
    %2228 = vmatpush.msra.mxu0 0.0
    %2229 = vmatpush.msra.mxu0 0.0
    %2230 = vmatpush.msra.mxu0 0.0
    %2231 = vmatpush.msra.mxu0 0.0
    %2232 = vmatpush.msra.mxu0 0.0
    %2233 = vmatpush.msra.mxu0 0.0
    %2234 = vmatpush.msra.mxu0 0.0
    %2235 = vmatpush.msra.mxu0 0.0
    %2236 = vmatpush.msra.mxu0 0.0
    %2237 = vmatpush.msra.mxu0 0.0
    %2238 = vmatpush.msra.mxu0 0.0
    %2239 = vmatpush.msra.mxu0 0.0
    %2240 = vmatpush.msra.mxu0 0.0
    %2241 = vmatpush.msra.mxu0 %v1536
    %2242 = vmatpush.msra.mxu0 %v1482
    %2243 = vmatmul.f32.gmra.mxu0 %v2222
    %v2244 = vpop.f32.mrf.mxu0
    %v2245 = vadd.f32 0.0, %v2244
    %2246 = vmatmul.f32.gmra.mxu0 %v2225
    %v2247 = vpop.f32.mrf.mxu0
    %v2248 = vadd.f32 0.0, %v2247
    %2249 = vdwg.mxu0
    %v2251 = vsel %vm1928, %v2099, 0
    %v2254 = vsel %vm1928, %v2100, 0
    %2256 = vmatpush.msra.mxu0 0.0
    %2257 = vmatpush.msra.mxu0 0.0
    %2258 = vmatpush.msra.mxu0 0.0
    %2259 = vmatpush.msra.mxu0 0.0
    %2260 = vmatpush.msra.mxu0 0.0
    %2261 = vmatpush.msra.mxu0 0.0
    %2262 = vmatpush.msra.mxu0 0.0
    %2263 = vmatpush.msra.mxu0 0.0
    %2264 = vmatpush.msra.mxu0 0.0
    %2265 = vmatpush.msra.mxu0 0.0
    %2266 = vmatpush.msra.mxu0 0.0
    %2267 = vmatpush.msra.mxu0 0.0
    %2268 = vmatpush.msra.mxu0 0.0
    %2269 = vmatpush.msra.mxu0 0.0
    %2270 = vmatpush.msra.mxu0 %v1644
    %2271 = vmatpush.msra.mxu0 %v1590
    %2272 = vmatmul.f32.gmra.mxu0 %v2251
    %v2273 = vpop.f32.mrf.mxu0
    %v2274 = vadd.f32 0.0, %v2273
    %2275 = vmatmul.f32.gmra.mxu0 %v2254
    %v2276 = vpop.f32.mrf.mxu0
    %v2277 = vadd.f32 0.0, %v2276
    %2278 = vdwg.mxu0
    %v2280 = vsel %vm1928, %v2101, 0
    %v2283 = vsel %vm1928, %v2102, 0
    %2285 = vmatpush.msra.mxu0 0.0
    %2286 = vmatpush.msra.mxu0 0.0
    %2287 = vmatpush.msra.mxu0 0.0
    %2288 = vmatpush.msra.mxu0 0.0
    %2289 = vmatpush.msra.mxu0 0.0
    %2290 = vmatpush.msra.mxu0 0.0
    %2291 = vmatpush.msra.mxu0 0.0
    %2292 = vmatpush.msra.mxu0 0.0
    %2293 = vmatpush.msra.mxu0 0.0
    %2294 = vmatpush.msra.mxu0 0.0
    %2295 = vmatpush.msra.mxu0 0.0
    %2296 = vmatpush.msra.mxu0 0.0
    %2297 = vmatpush.msra.mxu0 0.0
    %2298 = vmatpush.msra.mxu0 0.0
    %2299 = vmatpush.msra.mxu0 %v1538
    %2300 = vmatpush.msra.mxu0 %v1484
    %2301 = vmatmul.f32.gmra.mxu0 %v2280
    %v2302 = vpop.f32.mrf.mxu0
    %v2303 = vadd.f32 0.0, %v2302
    %2304 = vmatmul.f32.gmra.mxu0 %v2283
    %v2305 = vpop.f32.mrf.mxu0
    %v2306 = vadd.f32 0.0, %v2305
    %2307 = vdwg.mxu0
    %v2309 = vsel %vm1928, %v2103, 0
    %v2312 = vsel %vm1928, %v2104, 0
    %2314 = vmatpush.msra.mxu0 0.0
    %2315 = vmatpush.msra.mxu0 0.0
    %2316 = vmatpush.msra.mxu0 0.0
    %2317 = vmatpush.msra.mxu0 0.0
    %2318 = vmatpush.msra.mxu0 0.0
    %2319 = vmatpush.msra.mxu0 0.0
    %2320 = vmatpush.msra.mxu0 0.0
    %2321 = vmatpush.msra.mxu0 0.0
    %2322 = vmatpush.msra.mxu0 0.0
    %2323 = vmatpush.msra.mxu0 0.0
    %2324 = vmatpush.msra.mxu0 0.0
    %2325 = vmatpush.msra.mxu0 0.0
    %2326 = vmatpush.msra.mxu0 0.0
    %2327 = vmatpush.msra.mxu0 0.0
    %2328 = vmatpush.msra.mxu0 %v1646
    %2329 = vmatpush.msra.mxu0 %v1592
    %2330 = vmatmul.f32.gmra.mxu0 %v2309
    %v2331 = vpop.f32.mrf.mxu0
    %v2332 = vadd.f32 0.0, %v2331
    %2333 = vmatmul.f32.gmra.mxu0 %v2312
    %v2334 = vpop.f32.mrf.mxu0
    %v2335 = vadd.f32 0.0, %v2334
    %2336 = vdwg.mxu0
    %v2337 = vrot.slane %v2245, 4
    %v2338 = vsel %vm247, %v2337, %v2129
    %v2339 = vrot.slane %v2129, 4
    %v2340 = vsel %vm247, %v2245, %v2339
    %v2342 = vunpack.c.l.s4 1983009808
    %v2343 = vunpack.c.0.s8 %v2342
    %v2344 = vperm.slane %v2338, %v2343
    %v2346 = vunpack.c.l.s4 1983009808
    %v2347 = vunpack.c.0.s8 %v2346
    %v2348 = vperm.slane %v2340, %v2347
    %v2349 = vrot.slane %v2303, 4
    %v2350 = vsel %vm247, %v2349, %v2187
    %v2351 = vrot.slane %v2187, 4
    %v2352 = vsel %vm247, %v2303, %v2351
    %v2354 = vunpack.c.l.s4 1983009808
    %v2355 = vunpack.c.0.s8 %v2354
    %v2356 = vperm.slane %v2350, %v2355
    %v2358 = vunpack.c.l.s4 1983009808
    %v2359 = vunpack.c.0.s8 %v2358
    %v2360 = vperm.slane %v2352, %v2359
    %v2361 = vrot.slane %v2356, 4
    %v2362 = vsel %vm247, %v2361, %v2344
    %v2363 = vrot.slane %v2344, 4
    %v2364 = vsel %vm247, %v2356, %v2363
    %v2366 = vunpack.c.l.s4 1934713408
    %v2367 = vunpack.c.0.s8 %v2366
    %v2368 = vperm.slane %v2362, %v2367
    %v2370 = vunpack.c.l.s4 1934713408
    %v2371 = vunpack.c.0.s8 %v2370
    %v2372 = vperm.slane %v2364, %v2371
    %v2373 = vrot.slane %v2360, 4
    %v2374 = vsel %vm247, %v2373, %v2348
    %v2375 = vrot.slane %v2348, 4
    %v2376 = vsel %vm247, %v2360, %v2375
    %v2378 = vunpack.c.l.s4 1934713408
    %v2379 = vunpack.c.0.s8 %v2378
    %v2380 = vperm.slane %v2374, %v2379
    %v2382 = vunpack.c.l.s4 1934713408
    %v2383 = vunpack.c.0.s8 %v2382
    %v2384 = vperm.slane %v2376, %v2383
    %v2385 = vrot.slane %v2368, 4
    %v2386 = vsel %vm247, 0.0, %v2385
    %v2387 = vrot.slane %v2372, 4
    %v2388 = vsel %vm247, 0.0, %v2387
    %v2389 = vrot.slane %v2380, 4
    %v2390 = vsel %vm247, 0.0, %v2389
    %v2391 = vrot.slane %v2384, 4
    %v2392 = vsel %vm247, 0.0, %v2391
    %v2393 = vrot.slane %v2248, 4
    %v2394 = vsel %vm247, %v2393, %v2132
    %v2395 = vrot.slane %v2132, 4
    %v2396 = vsel %vm247, %v2248, %v2395
    %v2398 = vunpack.c.l.s4 1983009808
    %v2399 = vunpack.c.0.s8 %v2398
    %v2400 = vperm.slane %v2394, %v2399
    %v2402 = vunpack.c.l.s4 1983009808
    %v2403 = vunpack.c.0.s8 %v2402
    %v2404 = vperm.slane %v2396, %v2403
    %v2405 = vrot.slane %v2306, 4
    %v2406 = vsel %vm247, %v2405, %v2190
    %v2407 = vrot.slane %v2190, 4
    %v2408 = vsel %vm247, %v2306, %v2407
    %v2410 = vunpack.c.l.s4 1983009808
    %v2411 = vunpack.c.0.s8 %v2410
    %v2412 = vperm.slane %v2406, %v2411
    %v2414 = vunpack.c.l.s4 1983009808
    %v2415 = vunpack.c.0.s8 %v2414
    %v2416 = vperm.slane %v2408, %v2415
    %v2417 = vrot.slane %v2412, 4
    %v2418 = vsel %vm247, %v2417, %v2400
    %v2419 = vrot.slane %v2400, 4
    %v2420 = vsel %vm247, %v2412, %v2419
    %v2422 = vunpack.c.l.s4 1934713408
    %v2423 = vunpack.c.0.s8 %v2422
    %v2424 = vperm.slane %v2418, %v2423
    %v2426 = vunpack.c.l.s4 1934713408
    %v2427 = vunpack.c.0.s8 %v2426
    %v2428 = vperm.slane %v2420, %v2427
    %v2429 = vrot.slane %v2416, 4
    %v2430 = vsel %vm247, %v2429, %v2404
    %v2431 = vrot.slane %v2404, 4
    %v2432 = vsel %vm247, %v2416, %v2431
    %v2434 = vunpack.c.l.s4 1934713408
    %v2435 = vunpack.c.0.s8 %v2434
    %v2436 = vperm.slane %v2430, %v2435
    %v2438 = vunpack.c.l.s4 1934713408
    %v2439 = vunpack.c.0.s8 %v2438
    %v2440 = vperm.slane %v2432, %v2439
    %v2441 = vrot.slane %v2424, 4
    %v2442 = vsel %vm247, 0.0, %v2441
    %v2443 = vrot.slane %v2428, 4
    %v2444 = vsel %vm247, 0.0, %v2443
    %v2445 = vrot.slane %v2436, 4
    %v2446 = vsel %vm247, 0.0, %v2445
    %v2447 = vrot.slane %v2440, 4
    %v2448 = vsel %vm247, 0.0, %v2447
    %v2449 = vrot.slane %v2274, 4
    %v2450 = vsel %vm247, %v2449, %v2158
    %v2451 = vrot.slane %v2158, 4
    %v2452 = vsel %vm247, %v2274, %v2451
    %v2454 = vunpack.c.l.s4 1983009808
    %v2455 = vunpack.c.0.s8 %v2454
    %v2456 = vperm.slane %v2450, %v2455
    %v2458 = vunpack.c.l.s4 1983009808
    %v2459 = vunpack.c.0.s8 %v2458
    %v2460 = vperm.slane %v2452, %v2459
    %v2461 = vrot.slane %v2332, 4
    %v2462 = vsel %vm247, %v2461, %v2216
    %v2463 = vrot.slane %v2216, 4
    %v2464 = vsel %vm247, %v2332, %v2463
    %v2466 = vunpack.c.l.s4 1983009808
    %v2467 = vunpack.c.0.s8 %v2466
    %v2468 = vperm.slane %v2462, %v2467
    %v2470 = vunpack.c.l.s4 1983009808
    %v2471 = vunpack.c.0.s8 %v2470
    %v2472 = vperm.slane %v2464, %v2471
    %v2473 = vrot.slane %v2468, 4
    %v2474 = vsel %vm247, %v2473, %v2456
    %v2475 = vrot.slane %v2456, 4
    %v2476 = vsel %vm247, %v2468, %v2475
    %v2478 = vunpack.c.l.s4 1934713408
    %v2479 = vunpack.c.0.s8 %v2478
    %v2480 = vperm.slane %v2474, %v2479
    %v2482 = vunpack.c.l.s4 1934713408
    %v2483 = vunpack.c.0.s8 %v2482
    %v2484 = vperm.slane %v2476, %v2483
    %v2485 = vrot.slane %v2472, 4
    %v2486 = vsel %vm247, %v2485, %v2460
    %v2487 = vrot.slane %v2460, 4
    %v2488 = vsel %vm247, %v2472, %v2487
    %v2490 = vunpack.c.l.s4 1934713408
    %v2491 = vunpack.c.0.s8 %v2490
    %v2492 = vperm.slane %v2486, %v2491
    %v2494 = vunpack.c.l.s4 1934713408
    %v2495 = vunpack.c.0.s8 %v2494
    %v2496 = vperm.slane %v2488, %v2495
    %v2497 = vrot.slane %v2480, 4
    %v2498 = vsel %vm247, 0.0, %v2497
    %v2499 = vrot.slane %v2484, 4
    %v2500 = vsel %vm247, 0.0, %v2499
    %v2501 = vrot.slane %v2492, 4
    %v2502 = vsel %vm247, 0.0, %v2501
    %v2503 = vrot.slane %v2496, 4
    %v2504 = vsel %vm247, 0.0, %v2503
    %v2505 = vrot.slane %v2277, 4
    %v2506 = vsel %vm247, %v2505, %v2161
    %v2507 = vrot.slane %v2161, 4
    %v2508 = vsel %vm247, %v2277, %v2507
    %v2510 = vunpack.c.l.s4 1983009808
    %v2511 = vunpack.c.0.s8 %v2510
    %v2512 = vperm.slane %v2506, %v2511
    %v2514 = vunpack.c.l.s4 1983009808
    %v2515 = vunpack.c.0.s8 %v2514
    %v2516 = vperm.slane %v2508, %v2515
    %v2517 = vrot.slane %v2335, 4
    %v2518 = vsel %vm247, %v2517, %v2219
    %v2519 = vrot.slane %v2219, 4
    %v2520 = vsel %vm247, %v2335, %v2519
    %v2522 = vunpack.c.l.s4 1983009808
    %v2523 = vunpack.c.0.s8 %v2522
    %v2524 = vperm.slane %v2518, %v2523
    %v2526 = vunpack.c.l.s4 1983009808
    %v2527 = vunpack.c.0.s8 %v2526
    %v2528 = vperm.slane %v2520, %v2527
    %v2529 = vrot.slane %v2524, 4
    %v2530 = vsel %vm247, %v2529, %v2512
    %v2531 = vrot.slane %v2512, 4
    %v2532 = vsel %vm247, %v2524, %v2531
    %v2534 = vunpack.c.l.s4 1934713408
    %v2535 = vunpack.c.0.s8 %v2534
    %v2536 = vperm.slane %v2530, %v2535
    %v2538 = vunpack.c.l.s4 1934713408
    %v2539 = vunpack.c.0.s8 %v2538
    %v2540 = vperm.slane %v2532, %v2539
    %v2541 = vrot.slane %v2528, 4
    %v2542 = vsel %vm247, %v2541, %v2516
    %v2543 = vrot.slane %v2516, 4
    %v2544 = vsel %vm247, %v2528, %v2543
    %v2546 = vunpack.c.l.s4 1934713408
    %v2547 = vunpack.c.0.s8 %v2546
    %v2548 = vperm.slane %v2542, %v2547
    %v2550 = vunpack.c.l.s4 1934713408
    %v2551 = vunpack.c.0.s8 %v2550
    %v2552 = vperm.slane %v2544, %v2551
    %v2553 = vrot.slane %v2536, 4
    %v2554 = vsel %vm247, 0.0, %v2553
    %v2555 = vrot.slane %v2540, 4
    %v2556 = vsel %vm247, 0.0, %v2555
    %v2557 = vrot.slane %v2548, 4
    %v2558 = vsel %vm247, 0.0, %v2557
    %v2559 = vrot.slane %v2552, 4
    %v2560 = vsel %vm247, 0.0, %v2559
    %v2561 = vsel %vm247, %v2387, %v2368
    %v2563 = vunpack.c.l.s4 1983009808
    %v2564 = vunpack.c.0.s8 %v2563
    %v2565 = vperm.slane %v2561, %v2564
    %v2566 = vrot.slane %v2388, 4
    %v2567 = vsel %vm247, %v2566, %v2386
    %v2569 = vunpack.c.l.s4 1983009808
    %v2570 = vunpack.c.0.s8 %v2569
    %v2571 = vperm.slane %v2567, %v2570
    %v2572 = vsel %vm247, %v2391, %v2380
    %v2574 = vunpack.c.l.s4 1983009808
    %v2575 = vunpack.c.0.s8 %v2574
    %v2576 = vperm.slane %v2572, %v2575
    %v2577 = vrot.slane %v2392, 4
    %v2578 = vsel %vm247, %v2577, %v2390
    %v2580 = vunpack.c.l.s4 1983009808
    %v2581 = vunpack.c.0.s8 %v2580
    %v2582 = vperm.slane %v2578, %v2581
    %v2583 = vrot.slane %v2571, 4
    %v2584 = vsel %vm247, %v2583, %v2565
    %v2585 = vrot.slane %v2565, 4
    %v2586 = vsel %vm247, %v2571, %v2585
    %v2588 = vunpack.c.l.s4 1934713408
    %v2589 = vunpack.c.0.s8 %v2588
    %v2590 = vperm.slane %v2584, %v2589
    %v2592 = vunpack.c.l.s4 1934713408
    %v2593 = vunpack.c.0.s8 %v2592
    %v2594 = vperm.slane %v2586, %v2593
    %v2595 = vrot.slane %v2582, 4
    %v2596 = vsel %vm247, %v2595, %v2576
    %v2597 = vrot.slane %v2576, 4
    %v2598 = vsel %vm247, %v2582, %v2597
    %v2600 = vunpack.c.l.s4 1934713408
    %v2601 = vunpack.c.0.s8 %v2600
    %v2602 = vperm.slane %v2596, %v2601
    %v2604 = vunpack.c.l.s4 1934713408
    %v2605 = vunpack.c.0.s8 %v2604
    %v2606 = vperm.slane %v2598, %v2605
    %v2607 = vrot.slane %v2602, 4
    %v2608 = vsel %vm247, %v2607, %v2590
    %v2609 = vrot.slane %v2590, 4
    %v2610 = vsel %vm247, %v2602, %v2609
    %v2611 = vrot.slane %v2606, 4
    %v2612 = vsel %vm247, %v2611, %v2594
    %v2613 = vrot.slane %v2594, 4
    %v2614 = vsel %vm247, %v2606, %v2613
    %v2615 = vsel %vm247, %v2443, %v2424
    %v2617 = vunpack.c.l.s4 1983009808
    %v2618 = vunpack.c.0.s8 %v2617
    %v2619 = vperm.slane %v2615, %v2618
    %v2620 = vrot.slane %v2444, 4
    %v2621 = vsel %vm247, %v2620, %v2442
    %v2623 = vunpack.c.l.s4 1983009808
    %v2624 = vunpack.c.0.s8 %v2623
    %v2625 = vperm.slane %v2621, %v2624
    %v2626 = vsel %vm247, %v2447, %v2436
    %v2628 = vunpack.c.l.s4 1983009808
    %v2629 = vunpack.c.0.s8 %v2628
    %v2630 = vperm.slane %v2626, %v2629
    %v2631 = vrot.slane %v2448, 4
    %v2632 = vsel %vm247, %v2631, %v2446
    %v2634 = vunpack.c.l.s4 1983009808
    %v2635 = vunpack.c.0.s8 %v2634
    %v2636 = vperm.slane %v2632, %v2635
    %v2637 = vrot.slane %v2625, 4
    %v2638 = vsel %vm247, %v2637, %v2619
    %v2639 = vrot.slane %v2619, 4
    %v2640 = vsel %vm247, %v2625, %v2639
    %v2642 = vunpack.c.l.s4 1934713408
    %v2643 = vunpack.c.0.s8 %v2642
    %v2644 = vperm.slane %v2638, %v2643
    %v2646 = vunpack.c.l.s4 1934713408
    %v2647 = vunpack.c.0.s8 %v2646
    %v2648 = vperm.slane %v2640, %v2647
    %v2649 = vrot.slane %v2636, 4
    %v2650 = vsel %vm247, %v2649, %v2630
    %v2651 = vrot.slane %v2630, 4
    %v2652 = vsel %vm247, %v2636, %v2651
    %v2654 = vunpack.c.l.s4 1934713408
    %v2655 = vunpack.c.0.s8 %v2654
    %v2656 = vperm.slane %v2650, %v2655
    %v2658 = vunpack.c.l.s4 1934713408
    %v2659 = vunpack.c.0.s8 %v2658
    %v2660 = vperm.slane %v2652, %v2659
    %v2661 = vrot.slane %v2656, 4
    %v2662 = vsel %vm247, %v2661, %v2644
    %v2663 = vrot.slane %v2644, 4
    %v2664 = vsel %vm247, %v2656, %v2663
    %v2665 = vrot.slane %v2660, 4
    %v2666 = vsel %vm247, %v2665, %v2648
    %v2667 = vrot.slane %v2648, 4
    %v2668 = vsel %vm247, %v2660, %v2667
    %v2669 = vsel %vm247, %v2499, %v2480
    %v2671 = vunpack.c.l.s4 1983009808
    %v2672 = vunpack.c.0.s8 %v2671
    %v2673 = vperm.slane %v2669, %v2672
    %v2674 = vrot.slane %v2500, 4
    %v2675 = vsel %vm247, %v2674, %v2498
    %v2677 = vunpack.c.l.s4 1983009808
    %v2678 = vunpack.c.0.s8 %v2677
    %v2679 = vperm.slane %v2675, %v2678
    %v2680 = vsel %vm247, %v2503, %v2492
    %v2682 = vunpack.c.l.s4 1983009808
    %v2683 = vunpack.c.0.s8 %v2682
    %v2684 = vperm.slane %v2680, %v2683
    %v2685 = vrot.slane %v2504, 4
    %v2686 = vsel %vm247, %v2685, %v2502
    %v2688 = vunpack.c.l.s4 1983009808
    %v2689 = vunpack.c.0.s8 %v2688
    %v2690 = vperm.slane %v2686, %v2689
    %v2691 = vrot.slane %v2679, 4
    %v2692 = vsel %vm247, %v2691, %v2673
    %v2693 = vrot.slane %v2673, 4
    %v2694 = vsel %vm247, %v2679, %v2693
    %v2696 = vunpack.c.l.s4 1934713408
    %v2697 = vunpack.c.0.s8 %v2696
    %v2698 = vperm.slane %v2692, %v2697
    %v2700 = vunpack.c.l.s4 1934713408
    %v2701 = vunpack.c.0.s8 %v2700
    %v2702 = vperm.slane %v2694, %v2701
    %v2703 = vrot.slane %v2690, 4
    %v2704 = vsel %vm247, %v2703, %v2684
    %v2705 = vrot.slane %v2684, 4
    %v2706 = vsel %vm247, %v2690, %v2705
    %v2708 = vunpack.c.l.s4 1934713408
    %v2709 = vunpack.c.0.s8 %v2708
    %v2710 = vperm.slane %v2704, %v2709
    %v2712 = vunpack.c.l.s4 1934713408
    %v2713 = vunpack.c.0.s8 %v2712
    %v2714 = vperm.slane %v2706, %v2713
    %v2715 = vrot.slane %v2710, 4
    %v2716 = vsel %vm247, %v2715, %v2698
    %v2717 = vrot.slane %v2698, 4
    %v2718 = vsel %vm247, %v2710, %v2717
    %v2719 = vrot.slane %v2714, 4
    %v2720 = vsel %vm247, %v2719, %v2702
    %v2721 = vrot.slane %v2702, 4
    %v2722 = vsel %vm247, %v2714, %v2721
    %v2723 = vsel %vm247, %v2555, %v2536
    %v2725 = vunpack.c.l.s4 1983009808
    %v2726 = vunpack.c.0.s8 %v2725
    %v2727 = vperm.slane %v2723, %v2726
    %v2728 = vrot.slane %v2556, 4
    %v2729 = vsel %vm247, %v2728, %v2554
    %v2731 = vunpack.c.l.s4 1983009808
    %v2732 = vunpack.c.0.s8 %v2731
    %v2733 = vperm.slane %v2729, %v2732
    %v2734 = vsel %vm247, %v2559, %v2548
    %v2736 = vunpack.c.l.s4 1983009808
    %v2737 = vunpack.c.0.s8 %v2736
    %v2738 = vperm.slane %v2734, %v2737
    %v2739 = vrot.slane %v2560, 4
    %v2740 = vsel %vm247, %v2739, %v2558
    %v2742 = vunpack.c.l.s4 1983009808
    %v2743 = vunpack.c.0.s8 %v2742
    %v2744 = vperm.slane %v2740, %v2743
    %v2745 = vrot.slane %v2733, 4
    %v2746 = vsel %vm247, %v2745, %v2727
    %v2747 = vrot.slane %v2727, 4
    %v2748 = vsel %vm247, %v2733, %v2747
    %v2750 = vunpack.c.l.s4 1934713408
    %v2751 = vunpack.c.0.s8 %v2750
    %v2752 = vperm.slane %v2746, %v2751
    %v2754 = vunpack.c.l.s4 1934713408
    %v2755 = vunpack.c.0.s8 %v2754
    %v2756 = vperm.slane %v2748, %v2755
    %v2757 = vrot.slane %v2744, 4
    %v2758 = vsel %vm247, %v2757, %v2738
    %v2759 = vrot.slane %v2738, 4
    %v2760 = vsel %vm247, %v2744, %v2759
    %v2762 = vunpack.c.l.s4 1934713408
    %v2763 = vunpack.c.0.s8 %v2762
    %v2764 = vperm.slane %v2758, %v2763
    %v2766 = vunpack.c.l.s4 1934713408
    %v2767 = vunpack.c.0.s8 %v2766
    %v2768 = vperm.slane %v2760, %v2767
    %v2769 = vrot.slane %v2764, 4
    %v2770 = vsel %vm247, %v2769, %v2752
    %v2771 = vrot.slane %v2752, 4
    %v2772 = vsel %vm247, %v2764, %v2771
    %v2773 = vrot.slane %v2768, 4
    %v2774 = vsel %vm247, %v2773, %v2756
    %v2775 = vrot.slane %v2756, 4
    %v2776 = vsel %vm247, %v2768, %v2775
    %2781 = vrot.lane.b32.xlu0 %v2610, 8
    %v2782 = vpop.permute.xlu0 %2781
    %2783 = vrot.lane.b32.xlu0 %v2664, 8
    %v2784 = vpop.permute.xlu0 %2783
    %2785 = vrot.lane.b32.xlu0 %v2718, 8
    %v2786 = vpop.permute.xlu0 %2785
    %2787 = vrot.lane.b32.xlu0 %v2772, 8
    %v2788 = vpop.permute.xlu0 %2787
    %2797 = vrot.lane.b32.xlu0 %v2612, 16
    %v2798 = vpop.permute.xlu0 %2797
    %2799 = vrot.lane.b32.xlu0 %v2666, 16
    %v2800 = vpop.permute.xlu0 %2799
    %2801 = vrot.lane.b32.xlu0 %v2720, 16
    %v2802 = vpop.permute.xlu0 %2801
    %2803 = vrot.lane.b32.xlu0 %v2774, 16
    %v2804 = vpop.permute.xlu0 %2803
    %2813 = vrot.lane.b32.xlu0 %v2614, 24
    %v2814 = vpop.permute.xlu0 %2813
    %2815 = vrot.lane.b32.xlu0 %v2668, 24
    %v2816 = vpop.permute.xlu0 %2815
    %2817 = vrot.lane.b32.xlu0 %v2722, 24
    %v2818 = vpop.permute.xlu0 %2817
    %2819 = vrot.lane.b32.xlu0 %v2776, 24
    %v2820 = vpop.permute.xlu0 %2819
    %v2825 = vsel %vm1647, %v2608, %v2782
    %v2826 = vsel %vm1647, %v2662, %v2784
    %v2827 = vsel %vm1647, %v2716, %v2786
    %v2828 = vsel %vm1647, %v2770, %v2788
    %v2829 = vsel %vm1928, %v2825, %v2798
    %v2830 = vsel %vm1928, %v2826, %v2800
    %v2831 = vsel %vm1928, %v2827, %v2802
    %v2832 = vsel %vm1928, %v2828, %v2804
    %vm2833 = vcmask 195584
    %v2834 = vsel %vm2833, %v2829, %v2814
    %v2835 = vsel %vm2833, %v2830, %v2816
    %v2836 = vsel %vm2833, %v2831, %v2818
    %v2837 = vsel %vm2833, %v2832, %v2820
    %v2838 = vld [vmem:[#allocation8] sm:$0xff]
    %v2839 = vld [vmem:[#allocation8 + $0x8] sm:$0xff]
    %v2840 = vld [vmem:[#allocation8 + $0x10] sm:$0xff]
    %v2841 = vld [vmem:[#allocation8 + $0x18] sm:$0xff]
    %v2842 = vld [vmem:[%s4] sm:$0x1]
    %v2844 = vperm.slane %v2842, 0
    %v2847 = vsel %vm106, %v2834, 0
    %v2850 = vsel %vm106, %v2835, 0
    %v2853 = vsel %vm106, %v2836, 0
    %v2856 = vsel %vm106, %v2837, 0
    %2858 = vmatpush.msra.mxu0 0.0
    %2859 = vmatpush.msra.mxu0 0.0
    %2860 = vmatpush.msra.mxu0 0.0
    %2861 = vmatpush.msra.mxu0 0.0
    %2862 = vmatpush.msra.mxu0 0.0
    %2863 = vmatpush.msra.mxu0 0.0
    %2864 = vmatpush.msra.mxu0 0.0
    %2865 = vmatpush.msra.mxu0 0.0
    %2866 = vmatpush.msra.mxu0 0.0
    %2867 = vmatpush.msra.mxu0 0.0
    %2868 = vmatpush.msra.mxu0 0.0
    %2869 = vmatpush.msra.mxu0 0.0
    %2870 = vmatpush.msra.mxu0 %v2841
    %2871 = vmatpush.msra.mxu0 %v2840
    %2872 = vmatpush.msra.mxu0 %v2839
    %2873 = vmatpush.msra.mxu0 %v2838
    %2874 = vmatmul.f32.gmra.mxu0 %v2847
    %v2875 = vpop.f32.mrf.mxu0
    %v2876 = vadd.f32 %v2844, %v2875
    %2877 = vmatmul.f32.gmra.mxu0 %v2850
    %v2878 = vpop.f32.mrf.mxu0
    %v2879 = vadd.f32 %v2844, %v2878
    %2880 = vmatmul.f32.gmra.mxu0 %v2853
    %v2881 = vpop.f32.mrf.mxu0
    %v2882 = vadd.f32 %v2844, %v2881
    %2883 = vmatmul.f32.gmra.mxu0 %v2856
    %v2884 = vpop.f32.mrf.mxu0
    %v2885 = vadd.f32 %v2844, %v2884
    %2886 = vdwg.mxu0
    %2887 = vst.msk [vmem:[#allocation10] sm:$0xff] %vm106, %v2876
    %2888 = vst.msk [vmem:[#allocation10 + $0x8] sm:$0xff] %vm106, %v2879
    %2889 = vst.msk [vmem:[#allocation10 + $0x10] sm:$0xff] %vm106, %v2882
    %2890 = vst.msk [vmem:[#allocation10 + $0x18] sm:$0xff] %vm106, %v2885
    // Predicated region
    $region38: #{tpu_custom_call.1} parent=1 // pred_check
      _
    $region39: #{tpu_custom_call.1} parent=1 // pred_check_branch
      %2892 = sbr.rel (0) target = $region41
    $region40: #{tpu_custom_call.1} parent=1 // pred_region
      %2894 = vsyncadd [#allocation4], 0
      %s2895 = sshll.u32 [#allocation10], 4
      %s2896 = int_to_ptr.vmem [resolvable:$true] %s2895
      %s2897 = sshll.u32 %s5, 4
      %s2898 = int_to_ptr.hbm [resolvable:$true] %s2897
      %2903 = dma.vmem_to_hbm [thread:$0]  %s2896, 512, %s2898, [#allocation4], 128, 128, 8
    $region41: #{tpu_custom_call.1} parent=1 // pred_fallthru
      _
    // Predicated region
    $region42: #{tpu_custom_call.1} parent=1 // pred_check
      _
    $region43: #{tpu_custom_call.1} parent=1 // pred_check_branch
      %2905 = sbr.rel (0) target = $region45
    $region44: #{tpu_custom_call.1} parent=1 // pred_region
      %2907 = dma.done [#allocation4], 512
    $region45: #{tpu_custom_call.1} parent=1 // pred_fallthru
      _
    %2908 = vsyncpa [#allocation3], 1
    %2909 = vsyncpa [#allocation6], 1
    %2910 = vsyncpa [#allocation9], 1
    %2911 = vsyncpa [#allocation4], 1

</llo_original>
